<compile_context>
chip_gen: v7x
topology: tpu7x:2x2x1
jax: 0.10.0
libtpu: 0.0.40
codegen_flags: <defaults>
</compile_context>

<pallas_src>
from functools import partial

import jax
import jax.numpy as jnp
from jax import lax
from jax.experimental import pallas as pl
from jax.experimental.pallas import tpu as pltpu


def moe_kernel(x_ref, rw1_ref, rb1_ref, rw2_ref, rb2_ref,
               ew1_ref, eb1_ref, ew2_ref, eb2_ref,
               y_ref, w_scratch,
               *, num_experts, num_actives):
    e = pl.program_id(1)                                   # expert grid index
    x = x_ref[...]                                         # (TM, D) f32
    x_bf = x.astype(jnp.bfloat16)

    # ------- once per token tile (expert step 0): router + top-k softmax -------
    @pl.when(e == 0)
    def _():
        h = jnp.dot(x_bf, rw1_ref[...],
                    preferred_element_type=jnp.float32) + rb1_ref[...]
        h = h * jax.nn.sigmoid(h)                          # SiLU in f32
        rv = jnp.dot(h.astype(jnp.bfloat16), rw2_ref[...],
                     preferred_element_type=jnp.float32) + rb2_ref[...]   # (TM, E)

        TM, E = rv.shape
        col = lax.broadcasted_iota(jnp.int32, (TM, E), 1)

        # Iterative select-max top-k mask (k is small). Eval-mode path.
        # TODO(synk): training-mode gaussian routing noise not implemented.
        mask = jnp.zeros((TM, E), dtype=jnp.bool_)
        work = rv
        for _ in range(num_actives):
            m = jnp.max(work, axis=1, keepdims=True)
            is_max = work == m
            first = jnp.min(jnp.where(is_max, col, E), axis=1, keepdims=True)
            sel = col == first                             # first occurrence of max
            mask = jnp.logical_or(mask, sel)
            work = jnp.where(sel, -jnp.inf, work)

        masked = jnp.where(mask, rv, -jnp.inf)
        masked = masked - jnp.max(masked, axis=1, keepdims=True)
        p = jnp.exp(masked)                                # exactly 0 for unselected
        w_scratch[...] = p * pl.reciprocal(
            jnp.sum(p, axis=1, keepdims=True), approx=True)
        y_ref[...] = x                                     # residual init of accumulator

    # ------- expert e (weights streamed this grid step), weighted residual add ----
    he = jnp.dot(x_bf, ew1_ref[...],
                 preferred_element_type=jnp.float32) + eb1_ref[...]      # (TM, H)
    he = he * jax.nn.sigmoid(he)
    oe = jnp.dot(he.astype(jnp.bfloat16), ew2_ref[...],
                 preferred_element_type=jnp.float32) + eb2_ref[...]      # (TM, D)

    w = w_scratch[...]                                     # (TM, E)
    col = lax.broadcasted_iota(jnp.int32, w.shape, 1)
    we = jnp.sum(jnp.where(col == e, w, 0.0), axis=1, keepdims=True)     # column e
    y_ref[...] += we * oe


def init_params(key, dim, num_experts, hidden):
    ks = jax.random.split(key, 8)
    s = 0.05
    rw1 = (jax.random.normal(ks[0], (dim, dim), jnp.float32) * s).astype(jnp.bfloat16)
    rb1 = jax.random.normal(ks[1], (1, dim), jnp.float32) * s
    rw2 = (jax.random.normal(ks[2], (dim, num_experts), jnp.float32) * s).astype(jnp.bfloat16)
    rb2 = jax.random.normal(ks[3], (1, num_experts), jnp.float32) * s
    ew1 = (jax.random.normal(ks[4], (num_experts, dim, hidden), jnp.float32) * s).astype(jnp.bfloat16)
    eb1 = jax.random.normal(ks[5], (num_experts, 1, hidden), jnp.float32) * s
    ew2 = (jax.random.normal(ks[6], (num_experts, hidden, dim), jnp.float32) * s).astype(jnp.bfloat16)
    eb2 = jax.random.normal(ks[7], (num_experts, 1, dim), jnp.float32) * s
    return (rw1, rb1, rw2, rb2, ew1, eb1, ew2, eb2)


def moe_forward(x, params, num_actives, *, tm=64):
    """x: (B, F, dim) float32 -> (B, F, dim) float32."""
    B, F, D = x.shape
    N = B * F
    xt = x.reshape(N, D)
    rw1, rb1, rw2, rb2, ew1, eb1, ew2, eb2 = params
    E = rw2.shape[1]
    H = ew1.shape[2]

    tm = min(tm, N)
    assert N % tm == 0 and tm % 8 == 0, "token tile must divide N and be sublane-aligned"
    assert D % 128 == 0 and H % 128 == 0, "D/H must be lane-aligned (multiples of 128)"
    n_tiles = N // tm
    grid = (n_tiles, E)

    def resident(shape):
        return pl.BlockSpec(shape, lambda t, e: (0,) * len(shape))

    in_specs = [
        pl.BlockSpec((tm, D), lambda t, e: (t, 0)),          # x tile
        resident((D, D)), resident((1, D)),                  # router W1, b1 (resident)
        resident((D, E)), resident((1, E)),                  # router W2, b2 (resident)
        pl.BlockSpec((None, D, H), lambda t, e: (e, 0, 0)),  # expert W1 (streamed)
        pl.BlockSpec((None, 1, H), lambda t, e: (e, 0, 0)),  # expert b1
        pl.BlockSpec((None, H, D), lambda t, e: (e, 0, 0)),  # expert W2 (streamed)
        pl.BlockSpec((None, 1, D), lambda t, e: (e, 0, 0)),  # expert b2
    ]
    out_spec = pl.BlockSpec((tm, D), lambda t, e: (t, 0))    # resident across expert axis

    # Advisory cost estimate for the XLA scheduler.
    flops = 2 * N * (D * D + D * E + E * (D * H + H * D))
    transcendentals = N * (D + E + E * H)
    weight_bytes = sum(int(p.size) * p.dtype.itemsize for p in params)
    bytes_accessed = 2 * N * D * 4 + weight_bytes + n_tiles * E * 2 * (D * H) * 2

    # Explicit VMEM budget: x/y double buffers + resident router + 2-deep
    # expert-weight buffers + routing-weight scratch, with 2x headroom.
    vmem_bytes = (
        2 * 2 * tm * D * 4                     # x in / y out, double-buffered, f32
        + (D * D + D * E) * 2 + (D + E) * 4    # resident router weights/biases
        + 2 * 2 * (D * H + H * D) * 2          # streamed expert weights (bf16, 2 bufs)
        + 2 * 2 * (H + D) * 4                  # streamed expert biases
        + tm * E * 4                           # routing-weight scratch
    )
    vmem_limit = int(min(96 << 20, max(4 << 20, 2 * vmem_bytes)))

    kernel = partial(moe_kernel, num_experts=E, num_actives=num_actives)
    y = pl.pallas_call(
        kernel,
        out_shape=jax.ShapeDtypeStruct((N, D), jnp.float32),
        grid_spec=pltpu.PrefetchScalarGridSpec(
            num_scalar_prefetch=0,
            grid=grid,
            in_specs=in_specs,
            out_specs=out_spec,
            scratch_shapes=[pltpu.VMEM((tm, E), jnp.float32)],
        ),
        compiler_params=pltpu.CompilerParams(
            dimension_semantics=("parallel", "arbitrary"),
            vmem_limit_bytes=vmem_limit,
        ),
        cost_estimate=pl.CostEstimate(
            flops=int(flops),
            transcendentals=int(transcendentals),
            bytes_accessed=int(bytes_accessed),
        ),
    )(xt, *params)
    return y.reshape(B, F, D)


def moe_reference(x, params, num_actives):
    """Pure-JAX reference mirroring the torch semantics (eval mode), bf16 matmuls."""
    rw1, rb1, rw2, rb2, ew1, eb1, ew2, eb2 = params
    B, F, D = x.shape
    xt = x.reshape(B * F, D)
    xb = xt.astype(jnp.bfloat16)
    h = jax.nn.silu(jnp.dot(xb, rw1, preferred_element_type=jnp.float32) + rb1)
    rv = jnp.dot(h.astype(jnp.bfloat16), rw2, preferred_element_type=jnp.float32) + rb2
    E = rv.shape[1]
    _, idx = jax.lax.top_k(rv, num_actives)
    mask = jax.vmap(lambda m, i: m.at[i].set(True))(
        jnp.zeros_like(rv, dtype=bool), idx)
    w = jax.nn.softmax(jnp.where(mask, rv, -jnp.inf), axis=1)
    y = xt
    for e in range(E):
        he = jax.nn.silu(jnp.dot(xb, ew1[e], preferred_element_type=jnp.float32) + eb1[e])
        oe = jnp.dot(he.astype(jnp.bfloat16), ew2[e],
                     preferred_element_type=jnp.float32) + eb2[e]
        y = y + w[:, e:e + 1] * oe
    return y.reshape(B, F, D)


if __name__ == "__main__":
    B, F, D = 2, 64, 128        # batch, frames, dim (dim lane-aligned)
    E, K, H = 4, 2, 128         # num_experts, num_actives, expert hidden

    key = jax.random.PRNGKey(0)
    kx, kp = jax.random.split(key)
    x = jax.random.normal(kx, (B, F, D), jnp.float32)
    params = init_params(kp, D, E, H)

    y = moe_forward(x, params, K, tm=64)
    jax.block_until_ready(y)

    y_ref = moe_reference(x, params, K)
    assert y.shape == (B, F, D)
    assert jnp.allclose(y, y_ref, atol=1e-2, rtol=1e-2), "mismatch vs reference"

    print("KERNEL_OK")
</pallas_src>

<mosaic_0001>
module attributes {stable_mosaic.version = 11 : i64} {
  func.func @moe_kernel(%arg0: i32, %arg1: i32, %arg2: memref<64x128xf32, #tpu.memory_space<vmem>>, %arg3: memref<128x128xbf16, #tpu.memory_space<vmem>>, %arg4: memref<1x128xf32, #tpu.memory_space<vmem>>, %arg5: memref<128x4xbf16, #tpu.memory_space<vmem>>, %arg6: memref<1x4xf32, #tpu.memory_space<vmem>>, %arg7: memref<1x128x128xbf16, #tpu.memory_space<vmem>>, %arg8: memref<1x1x128xf32, #tpu.memory_space<vmem>>, %arg9: memref<1x128x128xbf16, #tpu.memory_space<vmem>>, %arg10: memref<1x1x128xf32, #tpu.memory_space<vmem>>, %arg11: memref<64x128xf32, #tpu.memory_space<vmem>>, %arg12: memref<64x4xf32, #tpu.memory_space<vmem>>) attributes {dimension_semantics = [#tpu.dimension_semantics<parallel>, #tpu.dimension_semantics<arbitrary>], iteration_bounds = array<i64: 2, 4>, scalar_prefetch = 0 : i64, scratch_operands = 1 : i64, tpu.core_type = #tpu.core_type<tc>, window_params = [{transform_indices = @transform_0, window_bounds = array<i64: 64, 128>}, {pipeline_mode = #tpu.pipeline_mode<synchronous>, transform_indices = @transform_1, window_bounds = array<i64: 128, 128>}, {pipeline_mode = #tpu.pipeline_mode<synchronous>, transform_indices = @transform_2, window_bounds = array<i64: 1, 128>}, {pipeline_mode = #tpu.pipeline_mode<synchronous>, transform_indices = @transform_3, window_bounds = array<i64: 128, 4>}, {pipeline_mode = #tpu.pipeline_mode<synchronous>, transform_indices = @transform_4, window_bounds = array<i64: 1, 4>}, {transform_indices = @transform_5, window_bounds = array<i64: 1, 128, 128>}, {transform_indices = @transform_6, window_bounds = array<i64: 1, 1, 128>}, {transform_indices = @transform_7, window_bounds = array<i64: 1, 128, 128>}, {transform_indices = @transform_8, window_bounds = array<i64: 1, 1, 128>}, {transform_indices = @transform_9, window_bounds = array<i64: 64, 128>}]} {
    %c0 = arith.constant 0 : index
    %c0_0 = arith.constant 0 : index
    %0 = vector.load %arg2[%c0, %c0_0] : memref<64x128xf32, #tpu.memory_space<vmem>>, vector<64x128xf32>
    %1 = arith.truncf %0 : vector<64x128xf32> to vector<64x128xbf16>
    %c0_i32 = arith.constant 0 : i32
    %2 = arith.cmpi eq, %arg1, %c0_i32 : i32
    %3 = arith.extui %2 : i1 to i32
    %c0_i32_1 = arith.constant 0 : i32
    %4 = arith.cmpi ne, %3, %c0_i32_1 : i32
    scf.if %4 {
      %c0_24 = arith.constant 0 : index
      %c0_25 = arith.constant 0 : index
      %39 = vector.load %arg3[%c0_24, %c0_25] : memref<128x128xbf16, #tpu.memory_space<vmem>>, vector<128x128xbf16>
      %cst_26 = arith.constant dense<0.000000e+00> : vector<64x128xf32>
      %40 = tpu.matmul %1, %39, %cst_26 {dimension_numbers = #tpu.dot_dimension_numbers<[1], [0], [0], [1], [0, 0, 1, 1], [], []>} : vector<64x128xbf16>, vector<128x128xbf16>, vector<64x128xf32> -> vector<64x128xf32>
      %c0_27 = arith.constant 0 : index
      %c0_28 = arith.constant 0 : index
      %41 = vector.load %arg4[%c0_27, %c0_28] : memref<1x128xf32, #tpu.memory_space<vmem>>, vector<1x128xf32>
      %42 = vector.broadcast %41 : vector<1x128xf32> to vector<64x128xf32>
      %43 = arith.addf %40, %42 : vector<64x128xf32>
      %44 = arith.negf %43 : vector<64x128xf32>
      %45 = math.exp %44 : vector<64x128xf32>
      %cst_29 = arith.constant 1.000000e+00 : f32
      %46 = vector.broadcast %cst_29 : f32 to vector<64x128xf32>
      %47 = arith.addf %46, %45 : vector<64x128xf32>
      %48 = arith.divf %46, %47 : vector<64x128xf32>
      %49 = arith.mulf %43, %48 : vector<64x128xf32>
      %50 = arith.truncf %49 : vector<64x128xf32> to vector<64x128xbf16>
      %c0_30 = arith.constant 0 : index
      %c0_31 = arith.constant 0 : index
      %51 = vector.load %arg5[%c0_30, %c0_31] : memref<128x4xbf16, #tpu.memory_space<vmem>>, vector<128x4xbf16>
      %cst_32 = arith.constant dense<0.000000e+00> : vector<64x4xf32>
      %52 = tpu.matmul %50, %51, %cst_32 {dimension_numbers = #tpu.dot_dimension_numbers<[1], [0], [0], [1], [0, 0, 1, 1], [], []>} : vector<64x128xbf16>, vector<128x4xbf16>, vector<64x4xf32> -> vector<64x4xf32>
      %c0_33 = arith.constant 0 : index
      %c0_34 = arith.constant 0 : index
      %53 = vector.load %arg6[%c0_33, %c0_34] : memref<1x4xf32, #tpu.memory_space<vmem>>, vector<1x4xf32>
      %54 = vector.broadcast %53 : vector<1x4xf32> to vector<64x4xf32>
      %55 = arith.addf %52, %54 : vector<64x4xf32>
      %56 = tpu.iota {dimensions = array<i32: 1>} : vector<64x4xi32>
      %false = arith.constant false
      %57 = vector.broadcast %false : i1 to vector<64x4xi1>
      %cst_35 = arith.constant dense<0xFF800000> : vector<64xf32>
      %58 = vector.multi_reduction <maximumf>, %55, %cst_35 [1] : vector<64x4xf32> to vector<64xf32>
      %59 = vector.shape_cast %58 : vector<64xf32> to vector<64x1xf32>
      %60 = vector.broadcast %59 : vector<64x1xf32> to vector<64x4xf32>
      %61 = arith.cmpf oeq, %55, %60 : vector<64x4xf32>
      %c4_i32 = arith.constant 4 : i32
      %62 = vector.broadcast %c4_i32 : i32 to vector<64x4xi32>
      %63 = arith.select %61, %56, %62 : vector<64x4xi1>, vector<64x4xi32>
      %cst_36 = arith.constant dense<2147483647> : vector<64xi32>
      %64 = vector.multi_reduction <minsi>, %63, %cst_36 [1] : vector<64x4xi32> to vector<64xi32>
      %65 = vector.shape_cast %64 : vector<64xi32> to vector<64x1xi32>
      %66 = vector.broadcast %65 : vector<64x1xi32> to vector<64x4xi32>
      %67 = arith.cmpi eq, %56, %66 : vector<64x4xi32>
      %68 = arith.ori %57, %67 : vector<64x4xi1>
      %cst_37 = arith.constant 0xFF800000 : f32
      %69 = vector.broadcast %cst_37 : f32 to vector<64x4xf32>
      %70 = arith.select %67, %69, %55 : vector<64x4xi1>, vector<64x4xf32>
      %cst_38 = arith.constant dense<0xFF800000> : vector<64xf32>
      %71 = vector.multi_reduction <maximumf>, %70, %cst_38 [1] : vector<64x4xf32> to vector<64xf32>
      %72 = vector.shape_cast %71 : vector<64xf32> to vector<64x1xf32>
      %73 = vector.broadcast %72 : vector<64x1xf32> to vector<64x4xf32>
      %74 = arith.cmpf oeq, %70, %73 : vector<64x4xf32>
      %c4_i32_39 = arith.constant 4 : i32
      %75 = vector.broadcast %c4_i32_39 : i32 to vector<64x4xi32>
      %76 = arith.select %74, %56, %75 : vector<64x4xi1>, vector<64x4xi32>
      %cst_40 = arith.constant dense<2147483647> : vector<64xi32>
      %77 = vector.multi_reduction <minsi>, %76, %cst_40 [1] : vector<64x4xi32> to vector<64xi32>
      %78 = vector.shape_cast %77 : vector<64xi32> to vector<64x1xi32>
      %79 = vector.broadcast %78 : vector<64x1xi32> to vector<64x4xi32>
      %80 = arith.cmpi eq, %56, %79 : vector<64x4xi32>
      %81 = arith.ori %68, %80 : vector<64x4xi1>
      %cst_41 = arith.constant 0xFF800000 : f32
      %82 = vector.broadcast %cst_41 : f32 to vector<64x4xf32>
      %83 = arith.select %81, %55, %82 : vector<64x4xi1>, vector<64x4xf32>
      %cst_42 = arith.constant dense<0xFF800000> : vector<64xf32>
      %84 = vector.multi_reduction <maximumf>, %83, %cst_42 [1] : vector<64x4xf32> to vector<64xf32>
      %85 = vector.shape_cast %84 : vector<64xf32> to vector<64x1xf32>
      %86 = vector.broadcast %85 : vector<64x1xf32> to vector<64x4xf32>
      %87 = arith.subf %83, %86 : vector<64x4xf32>
      %88 = math.exp %87 : vector<64x4xf32>
      %cst_43 = arith.constant dense<0.000000e+00> : vector<64xf32>
      %89 = vector.multi_reduction <add>, %88, %cst_43 [1] : vector<64x4xf32> to vector<64xf32>
      %90 = vector.shape_cast %89 : vector<64xf32> to vector<64x1xf32>
      %91 = tpu.reciprocal %90 {approx = true} : vector<64x1xf32> -> vector<64x1xf32>
      %92 = vector.broadcast %91 : vector<64x1xf32> to vector<64x4xf32>
      %93 = arith.mulf %88, %92 : vector<64x4xf32>
      %c0_44 = arith.constant 0 : index
      %c0_45 = arith.constant 0 : index
      %94 = vector.load %arg12[%c0_44, %c0_45] : memref<64x4xf32, #tpu.memory_space<vmem>>, vector<64x4xf32>
      tpu.vector_store %arg12[%c0_44, %c0_45], %93 {strides = array<i32>} : memref<64x4xf32, #tpu.memory_space<vmem>>, vector<64x4xf32>,
      %c0_46 = arith.constant 0 : index
      %c0_47 = arith.constant 0 : index
      %95 = vector.load %arg11[%c0_46, %c0_47] : memref<64x128xf32, #tpu.memory_space<vmem>>, vector<64x128xf32>
      tpu.vector_store %arg11[%c0_46, %c0_47], %0 {strides = array<i32>} : memref<64x128xf32, #tpu.memory_space<vmem>>, vector<64x128xf32>,
    } else {
    }
    %c0_2 = arith.constant 0 : index
    %c0_3 = arith.constant 0 : index
    %c0_4 = arith.constant 0 : index
    %5 = vector.load %arg7[%c0_2, %c0_3, %c0_4] : memref<1x128x128xbf16, #tpu.memory_space<vmem>>, vector<1x128x128xbf16>
    %6 = vector.shape_cast %5 : vector<1x128x128xbf16> to vector<128x128xbf16>
    %cst = arith.constant dense<0.000000e+00> : vector<64x128xf32>
    %7 = tpu.matmul %1, %6, %cst {dimension_numbers = #tpu.dot_dimension_numbers<[1], [0], [0], [1], [0, 0, 1, 1], [], []>} : vector<64x128xbf16>, vector<128x128xbf16>, vector<64x128xf32> -> vector<64x128xf32>
    %c0_5 = arith.constant 0 : index
    %c0_6 = arith.constant 0 : index
    %c0_7 = arith.constant 0 : index
    %8 = vector.load %arg8[%c0_5, %c0_6, %c0_7] : memref<1x1x128xf32, #tpu.memory_space<vmem>>, vector<1x1x128xf32>
    %9 = vector.shape_cast %8 : vector<1x1x128xf32> to vector<1x128xf32>
    %10 = vector.broadcast %9 : vector<1x128xf32> to vector<64x128xf32>
    %11 = arith.addf %7, %10 : vector<64x128xf32>
    %12 = arith.negf %11 : vector<64x128xf32>
    %13 = math.exp %12 : vector<64x128xf32>
    %cst_8 = arith.constant 1.000000e+00 : f32
    %14 = vector.broadcast %cst_8 : f32 to vector<64x128xf32>
    %15 = arith.addf %14, %13 : vector<64x128xf32>
    %16 = arith.divf %14, %15 : vector<64x128xf32>
    %17 = arith.mulf %11, %16 : vector<64x128xf32>
    %18 = arith.truncf %17 : vector<64x128xf32> to vector<64x128xbf16>
    %c0_9 = arith.constant 0 : index
    %c0_10 = arith.constant 0 : index
    %c0_11 = arith.constant 0 : index
    %19 = vector.load %arg9[%c0_9, %c0_10, %c0_11] : memref<1x128x128xbf16, #tpu.memory_space<vmem>>, vector<1x128x128xbf16>
    %20 = vector.shape_cast %19 : vector<1x128x128xbf16> to vector<128x128xbf16>
    %cst_12 = arith.constant dense<0.000000e+00> : vector<64x128xf32>
    %21 = tpu.matmul %18, %20, %cst_12 {dimension_numbers = #tpu.dot_dimension_numbers<[1], [0], [0], [1], [0, 0, 1, 1], [], []>} : vector<64x128xbf16>, vector<128x128xbf16>, vector<64x128xf32> -> vector<64x128xf32>
    %c0_13 = arith.constant 0 : index
    %c0_14 = arith.constant 0 : index
    %c0_15 = arith.constant 0 : index
    %22 = vector.load %arg10[%c0_13, %c0_14, %c0_15] : memref<1x1x128xf32, #tpu.memory_space<vmem>>, vector<1x1x128xf32>
    %23 = vector.shape_cast %22 : vector<1x1x128xf32> to vector<1x128xf32>
    %24 = vector.broadcast %23 : vector<1x128xf32> to vector<64x128xf32>
    %25 = arith.addf %21, %24 : vector<64x128xf32>
    %c0_16 = arith.constant 0 : index
    %c0_17 = arith.constant 0 : index
    %26 = vector.load %arg12[%c0_16, %c0_17] : memref<64x4xf32, #tpu.memory_space<vmem>>, vector<64x4xf32>
    %27 = tpu.iota {dimensions = array<i32: 1>} : vector<64x4xi32>
    %28 = vector.broadcast %arg1 : i32 to vector<64x4xi32>
    %29 = arith.cmpi eq, %27, %28 : vector<64x4xi32>
    %cst_18 = arith.constant 0.000000e+00 : f32
    %30 = vector.broadcast %cst_18 : f32 to vector<64x4xf32>
    %31 = arith.select %29, %26, %30 : vector<64x4xi1>, vector<64x4xf32>
    %cst_19 = arith.constant dense<0.000000e+00> : vector<64xf32>
    %32 = vector.multi_reduction <add>, %31, %cst_19 [1] : vector<64x4xf32> to vector<64xf32>
    %33 = vector.shape_cast %32 : vector<64xf32> to vector<64x1xf32>
    %c0_20 = arith.constant 0 : index
    %c0_21 = arith.constant 0 : index
    %34 = vector.load %arg11[%c0_20, %c0_21] : memref<64x128xf32, #tpu.memory_space<vmem>>, vector<64x128xf32>
    %35 = vector.broadcast %33 : vector<64x1xf32> to vector<64x128xf32>
    %36 = arith.mulf %35, %25 : vector<64x128xf32>
    %37 = arith.addf %34, %36 : vector<64x128xf32>
    %c0_22 = arith.constant 0 : index
    %c0_23 = arith.constant 0 : index
    %38 = vector.load %arg11[%c0_22, %c0_23] : memref<64x128xf32, #tpu.memory_space<vmem>>, vector<64x128xf32>
    tpu.vector_store %arg11[%c0_22, %c0_23], %37 {strides = array<i32>} : memref<64x128xf32, #tpu.memory_space<vmem>>, vector<64x128xf32>,
    return
  }
  func.func @transform_0(%arg0: i32, %arg1: i32) -> (i32, i32) {
    %c0_i32 = arith.constant 0 : i32
    %c0_i32_0 = arith.constant 0 : i32
    return %arg0, %c0_i32 : i32, i32
  }
  func.func @transform_1(%arg0: i32, %arg1: i32) -> (i32, i32) {
    %c0_i32 = arith.constant 0 : i32
    %c0_i32_0 = arith.constant 0 : i32
    %c0_i32_1 = arith.constant 0 : i32
    return %c0_i32, %c0_i32_0 : i32, i32
  }
  func.func @transform_2(%arg0: i32, %arg1: i32) -> (i32, i32) {
    %c0_i32 = arith.constant 0 : i32
    %c0_i32_0 = arith.constant 0 : i32
    %c0_i32_1 = arith.constant 0 : i32
    return %c0_i32, %c0_i32_0 : i32, i32
  }
  func.func @transform_3(%arg0: i32, %arg1: i32) -> (i32, i32) {
    %c0_i32 = arith.constant 0 : i32
    %c0_i32_0 = arith.constant 0 : i32
    %c0_i32_1 = arith.constant 0 : i32
    return %c0_i32, %c0_i32_0 : i32, i32
  }
  func.func @transform_4(%arg0: i32, %arg1: i32) -> (i32, i32) {
    %c0_i32 = arith.constant 0 : i32
    %c0_i32_0 = arith.constant 0 : i32
    %c0_i32_1 = arith.constant 0 : i32
    return %c0_i32, %c0_i32_0 : i32, i32
  }
  func.func @transform_5(%arg0: i32, %arg1: i32) -> (i32, i32, i32) {
    %c0_i32 = arith.constant 0 : i32
    %c0_i32_0 = arith.constant 0 : i32
    %c0_i32_1 = arith.constant 0 : i32
    return %arg1, %c0_i32, %c0_i32_0 : i32, i32, i32
  }
  func.func @transform_6(%arg0: i32, %arg1: i32) -> (i32, i32, i32) {
    %c0_i32 = arith.constant 0 : i32
    %c0_i32_0 = arith.constant 0 : i32
    %c0_i32_1 = arith.constant 0 : i32
    return %arg1, %c0_i32, %c0_i32_0 : i32, i32, i32
  }
  func.func @transform_7(%arg0: i32, %arg1: i32) -> (i32, i32, i32) {
    %c0_i32 = arith.constant 0 : i32
    %c0_i32_0 = arith.constant 0 : i32
    %c0_i32_1 = arith.constant 0 : i32
    return %arg1, %c0_i32, %c0_i32_0 : i32, i32, i32
  }
  func.func @transform_8(%arg0: i32, %arg1: i32) -> (i32, i32, i32) {
    %c0_i32 = arith.constant 0 : i32
    %c0_i32_0 = arith.constant 0 : i32
    %c0_i32_1 = arith.constant 0 : i32
    return %arg1, %c0_i32, %c0_i32_0 : i32, i32, i32
  }
  func.func @transform_9(%arg0: i32, %arg1: i32) -> (i32, i32) {
    %c0_i32 = arith.constant 0 : i32
    %c0_i32_0 = arith.constant 0 : i32
    return %arg0, %c0_i32 : i32, i32
  }
}

</mosaic_0001>

<llo_original>
// kernel: tpu_custom_call.1
$region0: #{tpu_custom_call.1}
  #allocation0 [shape = 'u32[]', space=smem, size = 0x4, offset = 0x4, fixed_abs, tag = 'smem constant byte address 0x4 - core index']
  #allocation1 [shape = 'u32[144,128]{1,0:T(1,128)}', space=vmem, size = 0x12000, scoped, tag = 'internal scratch']
  #allocation2 [shape = 'f32[64,4]{1,0:T(8,128)}', space=vmem, size = 0x8000, scoped, tag = 'scratch operand']
  %s0 = inlined_call_operand.hbm [shape: f32[128,128], index: 0, kind: input, shape index: {}]
  %s1 = inlined_call_operand.vmem [shape: bf16[128,128], index: 1, kind: input, shape index: {}]
  %s2 = inlined_call_operand.vmem [shape: f32[1,128], index: 2, kind: input, shape index: {}]
  %s3 = inlined_call_operand.vmem [shape: bf16[128,4], index: 3, kind: input, shape index: {}]
  %s4 = inlined_call_operand.vmem [shape: f32[1,4], index: 4, kind: input, shape index: {}]
  %s5 = inlined_call_operand.hbm [shape: bf16[4,128,128], index: 5, kind: input, shape index: {}]
  %s6 = inlined_call_operand.vmem [shape: f32[4,1,128], index: 6, kind: input, shape index: {}]
  %s7 = inlined_call_operand.hbm [shape: bf16[4,128,128], index: 7, kind: input, shape index: {}]
  %s8 = inlined_call_operand.vmem [shape: f32[4,1,128], index: 8, kind: input, shape index: {}]
  %s9 = inlined_call_operand.hbm [shape: f32[128,128], index: 9, kind: output, shape index: {}]
  %s10 = sld [smem:[#allocation0]]
  $region85: #{tpu_custom_call.1} parent=0
    _
  %s12 = ssub.s32 1, %s10
  %s13 = scalar_select 0, %s12, %s10
  $region1: #{tpu_custom_call.1} parent=0
    #allocation3 [shape = 'u8[65536]{0}', space=vmem, size = 0x10000, scoped, tag = 'input window, operand 0']
    #allocation4 [shape = 's32[2]{0}', space=sflag, size = 0x8, scoped, tag = 'scoped memory for tpu_custom_call.1']
    #allocation5 [shape = 's32[2]{0}', space=sflag, size = 0x8, scoped, tag = 'scoped memory for tpu_custom_call.1']
    #allocation6 [shape = 'u8[65536]{0}', space=vmem, size = 0x10000, scoped, tag = 'input window, operand 5']
    #allocation7 [shape = 's32[2]{0}', space=sflag, size = 0x8, scoped, tag = 'scoped memory for tpu_custom_call.1']
    #allocation8 [shape = 'u8[65536]{0}', space=vmem, size = 0x10000, scoped, tag = 'input window, operand 7']
    #allocation9 [shape = 'u8[65536]{0}', space=vmem, size = 0x10000, scoped, tag = 'output window, operand 0']
    %14 = vsyncpa [#allocation4], 0
    %s15 = scalar_lea.sflag [#allocation4], 1
    %16 = vsyncpa %s15, 0
    %17 = vsyncpa [#allocation7], 0
    %s18 = scalar_lea.sflag [#allocation7], 1
    %19 = vsyncpa %s18, 0
    %20 = vsyncpa [#allocation5], 0
    %s21 = scalar_lea.sflag [#allocation5], 1
    %22 = vsyncpa %s21, 0
    loop: start=0, step=1, limit=10
    $region2: #{tpu_custom_call.1} parent=1 // loop_pre_header
      _
    $region3: #{tpu_custom_call.1} parent=1 // loop_header
      %s24 = sphi 0, %s28
      %p25 = scmp.ge.s32.totalorder %s24, 10
      %s31 = sphi 0, %s43
      %s32 = sphi 0, %s39
      %s33 = sphi 0, %s31
      %s34 = sphi 0, %s32
      %s35 = sphi 0, %s33
      %s36 = sphi 0, %s34
      %s46 = sphi 0, %s48
      %s49 = sphi 0, %s46
      %s50 = sphi 0, %s49
      %s66 = sphi 0, %s50
      %s70 = sphi 0, %s70
      %s72 = sphi 0, %s70
      %s73 = sphi 0, %s72
      %s87 = sphi 0, %s73
      %s91 = sphi 0, %s91
      %s93 = sphi 0, %s91
      %s94 = sphi 0, %s93
      %s108 = sphi 0, %s94
      %s112 = sphi 0, %s112
      %s114 = sphi 0, %s112
      %s115 = sphi 0, %s114
      %s129 = sphi 0, %s115
      %s133 = sphi 0, %s133
      %s135 = sphi 0, %s133
      %s136 = sphi 0, %s135
      %s150 = sphi 0, %s136
      %s156 = sphi 0, %s158
      %s159 = sphi 0, %s156
      %s160 = sphi 0, %s159
      %s176 = sphi 0, %s160
      %s182 = sphi 0, %s184
      %s185 = sphi 0, %s182
      %s186 = sphi 0, %s185
      %s202 = sphi 0, %s186
      %s208 = sphi 0, %s210
      %s211 = sphi 0, %s208
      %s212 = sphi 0, %s211
      %s228 = sphi 0, %s212
      %s234 = sphi 0, %s236
      %s237 = sphi 0, %s234
      %s238 = sphi 0, %s237
      %s254 = sphi 0, %s238
      %s260 = sphi 0, %s262
      %s263 = sphi 0, %s260
      %s264 = sphi 0, %s263
      %s280 = sphi 0, %s264
    $region4: #{tpu_custom_call.1} parent=1 // loop_header_branch
      %27 = sbr.rel (%p25) target = $region8
    $region5: #{tpu_custom_call.1} parent=1 // loop_body
      %s29 = ssub.s32 %s24, 1
      %s30 = ssub.s32 %s24, 2
      %s37 = sadd.s32 1, %s32
      %p38 = scmp.ge.s32.totalorder %s37, 4
      %s39 = scalar_select %p38, 0, %s37
      %s40 = sadd.s32 1, %s31
      %s41 = scalar_select %p38, %s40, %s31
      %p42 = scmp.ge.s32.totalorder %s41, 2
      %s43 = scalar_select %p42, 0, %s41
      %s44 = ssub.s32 %s31, %s43
      %p45 = scmp.eq.s32.totalorder %s44, 0
      %s47 = sadd.s32 %s46, 1
      %s48 = scalar_select %p45, %s46, %s47
      %p51 = pneg %p45
      %p52 = scmp.eq.s32.totalorder %s24, 7
      %p53 = por %p51, %p52
      %p54 = scmp.ne.s32.totalorder %s46, %s49
      %p55 = scmp.eq.s32.totalorder %s24, 0
      %p56 = por %p54, %p55
      %p57 = scmp.ne.s32.totalorder %s46, %s49
      %p58 = scmp.eq.s32.totalorder %s29, 7
      %p59 = por %p57, %p58
      %p60 = scmp.ne.s32.totalorder %s49, %s50
      %p61 = scmp.eq.s32.totalorder %s29, 0
      %p62 = por %p60, %p61
      %p63 = scmp.ne.s32.totalorder %s49, %s50
      %p64 = scmp.eq.s32.totalorder %s30, 7
      %p65 = por %p63, %p64
      %p67 = scmp.ne.s32.totalorder %s50, %s66
      %p68 = scmp.eq.s32.totalorder %s30, 0
      %p69 = por %p67, %p68
      %s71 = sadd.s32 %s70, 1
      %p74 = scmp.eq.s32.totalorder %s24, 7
      %p75 = scmp.ne.s32.totalorder %s70, %s72
      %p76 = scmp.eq.s32.totalorder %s24, 0
      %p77 = por %p75, %p76
      %p78 = scmp.ne.s32.totalorder %s70, %s72
      %p79 = scmp.eq.s32.totalorder %s29, 7
      %p80 = por %p78, %p79
      %p81 = scmp.ne.s32.totalorder %s72, %s73
      %p82 = scmp.eq.s32.totalorder %s29, 0
      %p83 = por %p81, %p82
      %p84 = scmp.ne.s32.totalorder %s72, %s73
      %p85 = scmp.eq.s32.totalorder %s30, 7
      %p86 = por %p84, %p85
      %p88 = scmp.ne.s32.totalorder %s73, %s87
      %p89 = scmp.eq.s32.totalorder %s30, 0
      %p90 = por %p88, %p89
      %s92 = sadd.s32 %s91, 1
      %p95 = scmp.eq.s32.totalorder %s24, 7
      %p96 = scmp.ne.s32.totalorder %s91, %s93
      %p97 = scmp.eq.s32.totalorder %s24, 0
      %p98 = por %p96, %p97
      %p99 = scmp.ne.s32.totalorder %s91, %s93
      %p100 = scmp.eq.s32.totalorder %s29, 7
      %p101 = por %p99, %p100
      %p102 = scmp.ne.s32.totalorder %s93, %s94
      %p103 = scmp.eq.s32.totalorder %s29, 0
      %p104 = por %p102, %p103
      %p105 = scmp.ne.s32.totalorder %s93, %s94
      %p106 = scmp.eq.s32.totalorder %s30, 7
      %p107 = por %p105, %p106
      %p109 = scmp.ne.s32.totalorder %s94, %s108
      %p110 = scmp.eq.s32.totalorder %s30, 0
      %p111 = por %p109, %p110
      %s113 = sadd.s32 %s112, 1
      %p116 = scmp.eq.s32.totalorder %s24, 7
      %p117 = scmp.ne.s32.totalorder %s112, %s114
      %p118 = scmp.eq.s32.totalorder %s24, 0
      %p119 = por %p117, %p118
      %p120 = scmp.ne.s32.totalorder %s112, %s114
      %p121 = scmp.eq.s32.totalorder %s29, 7
      %p122 = por %p120, %p121
      %p123 = scmp.ne.s32.totalorder %s114, %s115
      %p124 = scmp.eq.s32.totalorder %s29, 0
      %p125 = por %p123, %p124
      %p126 = scmp.ne.s32.totalorder %s114, %s115
      %p127 = scmp.eq.s32.totalorder %s30, 7
      %p128 = por %p126, %p127
      %p130 = scmp.ne.s32.totalorder %s115, %s129
      %p131 = scmp.eq.s32.totalorder %s30, 0
      %p132 = por %p130, %p131
      %s134 = sadd.s32 %s133, 1
      %p137 = scmp.eq.s32.totalorder %s24, 7
      %p138 = scmp.ne.s32.totalorder %s133, %s135
      %p139 = scmp.eq.s32.totalorder %s24, 0
      %p140 = por %p138, %p139
      %p141 = scmp.ne.s32.totalorder %s133, %s135
      %p142 = scmp.eq.s32.totalorder %s29, 7
      %p143 = por %p141, %p142
      %p144 = scmp.ne.s32.totalorder %s135, %s136
      %p145 = scmp.eq.s32.totalorder %s29, 0
      %p146 = por %p144, %p145
      %p147 = scmp.ne.s32.totalorder %s135, %s136
      %p148 = scmp.eq.s32.totalorder %s30, 7
      %p149 = por %p147, %p148
      %p151 = scmp.ne.s32.totalorder %s136, %s150
      %p152 = scmp.eq.s32.totalorder %s30, 0
      %p153 = por %p151, %p152
      %s154 = ssub.s32 %s32, %s39
      %p155 = scmp.eq.s32.totalorder %s154, 0
      %s157 = sadd.s32 %s156, 1
      %s158 = scalar_select %p155, %s156, %s157
      %p161 = pneg %p155
      %p162 = scmp.eq.s32.totalorder %s24, 7
      %p163 = por %p161, %p162
      %p164 = scmp.ne.s32.totalorder %s156, %s159
      %p165 = scmp.eq.s32.totalorder %s24, 0
      %p166 = por %p164, %p165
      %p167 = scmp.ne.s32.totalorder %s156, %s159
      %p168 = scmp.eq.s32.totalorder %s29, 7
      %p169 = por %p167, %p168
      %p170 = scmp.ne.s32.totalorder %s159, %s160
      %p171 = scmp.eq.s32.totalorder %s29, 0
      %p172 = por %p170, %p171
      %p173 = scmp.ne.s32.totalorder %s159, %s160
      %p174 = scmp.eq.s32.totalorder %s30, 7
      %p175 = por %p173, %p174
      %p177 = scmp.ne.s32.totalorder %s160, %s176
      %p178 = scmp.eq.s32.totalorder %s30, 0
      %p179 = por %p177, %p178
      %s180 = ssub.s32 %s32, %s39
      %p181 = scmp.eq.s32.totalorder %s180, 0
      %s183 = sadd.s32 %s182, 1
      %s184 = scalar_select %p181, %s182, %s183
      %p187 = pneg %p181
      %p188 = scmp.eq.s32.totalorder %s24, 7
      %p189 = por %p187, %p188
      %p190 = scmp.ne.s32.totalorder %s182, %s185
      %p191 = scmp.eq.s32.totalorder %s24, 0
      %p192 = por %p190, %p191
      %p193 = scmp.ne.s32.totalorder %s182, %s185
      %p194 = scmp.eq.s32.totalorder %s29, 7
      %p195 = por %p193, %p194
      %p196 = scmp.ne.s32.totalorder %s185, %s186
      %p197 = scmp.eq.s32.totalorder %s29, 0
      %p198 = por %p196, %p197
      %p199 = scmp.ne.s32.totalorder %s185, %s186
      %p200 = scmp.eq.s32.totalorder %s30, 7
      %p201 = por %p199, %p200
      %p203 = scmp.ne.s32.totalorder %s186, %s202
      %p204 = scmp.eq.s32.totalorder %s30, 0
      %p205 = por %p203, %p204
      %s206 = ssub.s32 %s32, %s39
      %p207 = scmp.eq.s32.totalorder %s206, 0
      %s209 = sadd.s32 %s208, 1
      %s210 = scalar_select %p207, %s208, %s209
      %p213 = pneg %p207
      %p214 = scmp.eq.s32.totalorder %s24, 7
      %p215 = por %p213, %p214
      %p216 = scmp.ne.s32.totalorder %s208, %s211
      %p217 = scmp.eq.s32.totalorder %s24, 0
      %p218 = por %p216, %p217
      %p219 = scmp.ne.s32.totalorder %s208, %s211
      %p220 = scmp.eq.s32.totalorder %s29, 7
      %p221 = por %p219, %p220
      %p222 = scmp.ne.s32.totalorder %s211, %s212
      %p223 = scmp.eq.s32.totalorder %s29, 0
      %p224 = por %p222, %p223
      %p225 = scmp.ne.s32.totalorder %s211, %s212
      %p226 = scmp.eq.s32.totalorder %s30, 7
      %p227 = por %p225, %p226
      %p229 = scmp.ne.s32.totalorder %s212, %s228
      %p230 = scmp.eq.s32.totalorder %s30, 0
      %p231 = por %p229, %p230
      %s232 = ssub.s32 %s32, %s39
      %p233 = scmp.eq.s32.totalorder %s232, 0
      %s235 = sadd.s32 %s234, 1
      %s236 = scalar_select %p233, %s234, %s235
      %p239 = pneg %p233
      %p240 = scmp.eq.s32.totalorder %s24, 7
      %p241 = por %p239, %p240
      %p242 = scmp.ne.s32.totalorder %s234, %s237
      %p243 = scmp.eq.s32.totalorder %s24, 0
      %p244 = por %p242, %p243
      %p245 = scmp.ne.s32.totalorder %s234, %s237
      %p246 = scmp.eq.s32.totalorder %s29, 7
      %p247 = por %p245, %p246
      %p248 = scmp.ne.s32.totalorder %s237, %s238
      %p249 = scmp.eq.s32.totalorder %s29, 0
      %p250 = por %p248, %p249
      %p251 = scmp.ne.s32.totalorder %s237, %s238
      %p252 = scmp.eq.s32.totalorder %s30, 7
      %p253 = por %p251, %p252
      %p255 = scmp.ne.s32.totalorder %s238, %s254
      %p256 = scmp.eq.s32.totalorder %s30, 0
      %p257 = por %p255, %p256
      %s258 = ssub.s32 %s31, %s43
      %p259 = scmp.eq.s32.totalorder %s258, 0
      %s261 = sadd.s32 %s260, 1
      %s262 = scalar_select %p259, %s260, %s261
      %p265 = pneg %p259
      %p266 = scmp.eq.s32.totalorder %s24, 7
      %p267 = por %p265, %p266
      %p268 = scmp.ne.s32.totalorder %s260, %s263
      %p269 = scmp.eq.s32.totalorder %s24, 0
      %p270 = por %p268, %p269
      %p271 = scmp.ne.s32.totalorder %s260, %s263
      %p272 = scmp.eq.s32.totalorder %s29, 7
      %p273 = por %p271, %p272
      %p274 = scmp.ne.s32.totalorder %s263, %s264
      %p275 = scmp.eq.s32.totalorder %s29, 0
      %p276 = por %p274, %p275
      %p277 = scmp.ne.s32.totalorder %s263, %s264
      %p278 = scmp.eq.s32.totalorder %s30, 7
      %p279 = por %p277, %p278
      %p281 = scmp.ne.s32.totalorder %s264, %s280
      %p282 = scmp.eq.s32.totalorder %s30, 0
      %p283 = por %p281, %p282
      %p284 = scmp.le.s32.totalorder 1, %s24
      %p285 = scmp.lt.s32.totalorder %s24, 9
      %p286 = pnand %p284, %p285
      %p287 = pneg %p286
      // Predicated region
      $region9: #{tpu_custom_call.1} parent=5 // pred_check
        _
      $region10: #{tpu_custom_call.1} parent=5 // pred_check_branch
        %289 = sbr.rel (%p286) target = $region12
      $region11: #{tpu_custom_call.1} parent=5 // pred_region
        %s290 = ssub.s32 %s24, 1
        // Predicated region
        $region13: #{tpu_custom_call.1} parent=11 // pred_check
          %p291 = pneg %p83
        $region14: #{tpu_custom_call.1} parent=11 // pred_check_branch
          %293 = sbr.rel (%p291) target = $region16
        $region15: #{tpu_custom_call.1} parent=11 // pred_region
          _
        $region16: #{tpu_custom_call.1} parent=11 // pred_fallthru
          _
        // Predicated region
        $region17: #{tpu_custom_call.1} parent=11 // pred_check
          %p294 = pneg %p104
        $region18: #{tpu_custom_call.1} parent=11 // pred_check_branch
          %296 = sbr.rel (%p294) target = $region20
        $region19: #{tpu_custom_call.1} parent=11 // pred_region
          _
        $region20: #{tpu_custom_call.1} parent=11 // pred_fallthru
          _
        // Predicated region
        $region21: #{tpu_custom_call.1} parent=11 // pred_check
          %p297 = pneg %p125
        $region22: #{tpu_custom_call.1} parent=11 // pred_check_branch
          %299 = sbr.rel (%p297) target = $region24
        $region23: #{tpu_custom_call.1} parent=11 // pred_region
          _
        $region24: #{tpu_custom_call.1} parent=11 // pred_fallthru
          _
        // Predicated region
        $region25: #{tpu_custom_call.1} parent=11 // pred_check
          %p300 = pneg %p146
        $region26: #{tpu_custom_call.1} parent=11 // pred_check_branch
          %302 = sbr.rel (%p300) target = $region28
        $region27: #{tpu_custom_call.1} parent=11 // pred_region
          _
        $region28: #{tpu_custom_call.1} parent=11 // pred_fallthru
          _
      $region12: #{tpu_custom_call.1} parent=5 // pred_fallthru
        _
      %p303 = scmp.lt.s32.totalorder %s24, 8
      // Predicated region
      $region29: #{tpu_custom_call.1} parent=5 // pred_check
        %p304 = pneg %p303
      $region30: #{tpu_custom_call.1} parent=5 // pred_check_branch
        %306 = sbr.rel (%p304) target = $region32
      $region31: #{tpu_custom_call.1} parent=5 // pred_region
        // Predicated region
        $region33: #{tpu_custom_call.1} parent=31 // pred_check
          %p307 = pneg %p56
        $region34: #{tpu_custom_call.1} parent=31 // pred_check_branch
          %309 = sbr.rel (%p307) target = $region36
        $region35: #{tpu_custom_call.1} parent=31 // pred_region
          %s310 = sand.u32 %s46, 1
          %s311 = scalar_lea.sflag [#allocation4], %s310
          %s312 = sand.u32 %s46, 1
          %s313 = smul.addr %s312, 64
          %s314 = scalar_lea.vmem [#allocation3], %s313
          %s315 = smul.u32 8, %s31
          %s317 = ssub.s32 1024, 1024
          %318 = vsyncadd %s311, %s317
          %s319 = smul.addr %s315, 128
          %s320 = scalar_lea.hbm %s0, %s319
          %s321 = sshll.u32 %s314, 4
          %s322 = int_to_ptr.vmem [resolvable:$true] %s321
          %327 = dma.hbm_to_vmem [thread:$0]  %s320, 1024, %s322, %s311, 128, 128, 8
        $region36: #{tpu_custom_call.1} parent=31 // pred_fallthru
          _
        // Predicated region
        $region37: #{tpu_custom_call.1} parent=31 // pred_check
          %p328 = pneg %p166
        $region38: #{tpu_custom_call.1} parent=31 // pred_check_branch
          %330 = sbr.rel (%p328) target = $region40
        $region39: #{tpu_custom_call.1} parent=31 // pred_region
          %s331 = sand.u32 %s24, 1
          %s332 = scalar_lea.sflag [#allocation7], %s331
          %s333 = sand.u32 %s156, 1
          %s334 = smul.addr %s333, 64
          %s335 = scalar_lea.vmem [#allocation6], %s334
          %s337 = ssub.s32 1024, 1024
          %338 = vsyncadd %s332, %s337
          %s339 = smul.addr %s32, 16
          %s340 = smul.addr %s339, 64
          %s341 = scalar_lea.hbm %s5, %s340
          %s342 = sshll.u32 %s335, 4
          %s343 = int_to_ptr.vmem [resolvable:$true] %s342
          %348 = dma.hbm_to_vmem [thread:$0]  %s341, 1024, %s343, %s332, 64, 64, 4
        $region40: #{tpu_custom_call.1} parent=31 // pred_fallthru
          _
        // Predicated region
        $region41: #{tpu_custom_call.1} parent=31 // pred_check
          %p349 = pneg %p192
        $region42: #{tpu_custom_call.1} parent=31 // pred_check_branch
          %351 = sbr.rel (%p349) target = $region44
        $region43: #{tpu_custom_call.1} parent=31 // pred_region
          %p352 = scmp.lt.s32.totalorder %s32, 3
          %s353 = scalar_select %p352, %s32, 3
          %s354 = scalar_lea.vmem %s6, %s353
        $region44: #{tpu_custom_call.1} parent=31 // pred_fallthru
          _
        // Predicated region
        $region45: #{tpu_custom_call.1} parent=31 // pred_check
          %p355 = pneg %p218
        $region46: #{tpu_custom_call.1} parent=31 // pred_check_branch
          %357 = sbr.rel (%p355) target = $region48
        $region47: #{tpu_custom_call.1} parent=31 // pred_region
          %s358 = sand.u32 %s24, 1
          %s359 = scalar_lea.sflag [#allocation7], %s358
          %s360 = sand.u32 %s208, 1
          %s361 = smul.addr %s360, 64
          %s362 = scalar_lea.vmem [#allocation8], %s361
          %s364 = ssub.s32 1024, 1024
          %365 = vsyncadd %s359, %s364
          %s366 = smul.addr %s32, 16
          %s367 = smul.addr %s366, 64
          %s368 = scalar_lea.hbm %s7, %s367
          %s369 = sshll.u32 %s362, 4
          %s370 = int_to_ptr.vmem [resolvable:$true] %s369
          %375 = dma.hbm_to_vmem [thread:$0]  %s368, 1024, %s370, %s359, 64, 64, 4
        $region48: #{tpu_custom_call.1} parent=31 // pred_fallthru
          _
        // Predicated region
        $region49: #{tpu_custom_call.1} parent=31 // pred_check
          %p376 = pneg %p244
        $region50: #{tpu_custom_call.1} parent=31 // pred_check_branch
          %378 = sbr.rel (%p376) target = $region52
        $region51: #{tpu_custom_call.1} parent=31 // pred_region
          %p379 = scmp.lt.s32.totalorder %s32, 3
          %s380 = scalar_select %p379, %s32, 3
          %s381 = scalar_lea.vmem %s8, %s380
        $region52: #{tpu_custom_call.1} parent=31 // pred_fallthru
          _
      $region32: #{tpu_custom_call.1} parent=5 // pred_fallthru
        _
      %p382 = scmp.le.s32.totalorder 1, %s24
      %p383 = scmp.lt.s32.totalorder %s24, 9
      %p384 = pnand %p382, %p383
      %p385 = pneg %p384
      // Predicated region
      $region53: #{tpu_custom_call.1} parent=5 // pred_check
        _
      $region54: #{tpu_custom_call.1} parent=5 // pred_check_branch
        %387 = sbr.rel (%p384) target = $region56
      $region55: #{tpu_custom_call.1} parent=5 // pred_region
        %s388 = ssub.s32 %s24, 1
        %s389 = sand.u32 %s49, 1
        %s390 = scalar_lea.sflag [#allocation4], %s389
        %s391 = sand.u32 %s49, 1
        %s392 = smul.addr %s391, 64
        %s393 = scalar_lea.vmem [#allocation3], %s392
        // Predicated region
        $region57: #{tpu_custom_call.1} parent=55 // pred_check
          %p394 = pneg %p62
        $region58: #{tpu_custom_call.1} parent=55 // pred_check_branch
          %396 = sbr.rel (%p394) target = $region60
        $region59: #{tpu_custom_call.1} parent=55 // pred_region
          %397 = dma.done %s390, 1024
        $region60: #{tpu_custom_call.1} parent=55 // pred_fallthru
          _
        %s398 = sand.u32 %s29, 1
        %s399 = scalar_lea.sflag [#allocation7], %s398
        %s400 = sand.u32 %s159, 1
        %s401 = smul.addr %s400, 64
        %s402 = scalar_lea.vmem [#allocation6], %s401
        // Predicated region
        $region61: #{tpu_custom_call.1} parent=55 // pred_check
          %p403 = pneg %p172
        $region62: #{tpu_custom_call.1} parent=55 // pred_check_branch
          %405 = sbr.rel (%p403) target = $region64
        $region63: #{tpu_custom_call.1} parent=55 // pred_region
          %406 = dma.done %s399, 1024
        $region64: #{tpu_custom_call.1} parent=55 // pred_fallthru
          _
        %s407 = sand.u32 %s29, 1
        %s408 = scalar_lea.sflag [#allocation7], %s407
        %s409 = sand.u32 %s211, 1
        %s410 = smul.addr %s409, 64
        %s411 = scalar_lea.vmem [#allocation8], %s410
        // Predicated region
        $region65: #{tpu_custom_call.1} parent=55 // pred_check
          %p412 = pneg %p224
        $region66: #{tpu_custom_call.1} parent=55 // pred_check_branch
          %414 = sbr.rel (%p412) target = $region68
        $region67: #{tpu_custom_call.1} parent=55 // pred_region
          %415 = dma.done %s408, 1024
        $region68: #{tpu_custom_call.1} parent=55 // pred_fallthru
          _
        %s416 = sand.u32 %s49, 1
        %s417 = scalar_lea.sflag [#allocation4], %s416
        %s418 = sand.u32 %s49, 1
        %s419 = smul.addr %s418, 64
        %s420 = scalar_lea.vmem [#allocation3], %s419
        %p421 = pneg %p62
        %p422 = pneg %p59
        %p423 = pneg %p83
        %p424 = pneg %p80
        %p425 = pneg %p104
        %p426 = pneg %p101
        %p427 = pneg %p125
        %p428 = pneg %p122
        %p429 = pneg %p146
        %p430 = pneg %p143
        %s431 = sand.u32 %s29, 1
        %s432 = scalar_lea.sflag [#allocation7], %s431
        %s433 = sand.u32 %s159, 1
        %s434 = smul.addr %s433, 64
        %s435 = scalar_lea.vmem [#allocation6], %s434
        %p436 = pneg %p172
        %p437 = pneg %p169
        %p438 = scmp.lt.s32.totalorder %s34, 3
        %s439 = scalar_select %p438, %s34, 3
        %s440 = scalar_lea.vmem %s6, %s439
        %p441 = pneg %p198
        %p442 = pneg %p195
        %s443 = sand.u32 %s29, 1
        %s444 = scalar_lea.sflag [#allocation7], %s443
        %s445 = sand.u32 %s211, 1
        %s446 = smul.addr %s445, 64
        %s447 = scalar_lea.vmem [#allocation8], %s446
        %p448 = pneg %p224
        %p449 = pneg %p221
        %p450 = scmp.lt.s32.totalorder %s34, 3
        %s451 = scalar_select %p450, %s34, 3
        %s452 = scalar_lea.vmem %s8, %s451
        %p453 = pneg %p250
        %p454 = pneg %p247
        %p455 = pneg %p276
        %p456 = pneg %p273
        %s457 = sand.u32 %s263, 1
        %s458 = scalar_lea.sflag [#allocation5], %s457
        %s459 = sand.u32 %s263, 1
        %s460 = smul.addr %s459, 64
        %s461 = scalar_lea.vmem [#allocation9], %s460
        %s462 = smul.u32 8, %s33
        %p463 = scmp.lt.s32.totalorder %s34, 3
        %s464 = scalar_select %p463, %s34, 3
        %s465 = scalar_lea.vmem %s6, %s464
        %p466 = scmp.lt.s32.totalorder %s34, 3
        %s467 = scalar_select %p466, %s34, 3
        %s468 = scalar_lea.vmem %s8, %s467
        %s469 = smul.u32 8, %s33
        %v471 = vld [vmem:[%s393] sm:$0xff]
        %v472 = vld [vmem:[%s393 + $0x8] sm:$0xff]
        %v473 = vld [vmem:[%s393 + $0x10] sm:$0xff]
        %v474 = vld [vmem:[%s393 + $0x18] sm:$0xff]
        %v475 = vld [vmem:[%s393 + $0x20] sm:$0xff]
        %v476 = vld [vmem:[%s393 + $0x28] sm:$0xff]
        %v477 = vld [vmem:[%s393 + $0x30] sm:$0xff]
        %v478 = vld [vmem:[%s393 + $0x38] sm:$0xff]
        %v479 = vpack.c.bf16 %v472, %v471
        %v480 = vpack.c.bf16 %v474, %v473
        %v481 = vpack.c.bf16 %v476, %v475
        %v482 = vpack.c.bf16 %v478, %v477
        %p483 = scmp.eq.s32.totalorder %s34, 0
        // Predicated region
        $region69: #{tpu_custom_call.1} parent=55 // pred_check
          %p484 = pneg %p483
        $region70: #{tpu_custom_call.1} parent=55 // pred_check_branch
          %486 = sbr.rel (%p484) target = $region72
        $region71: #{tpu_custom_call.1} parent=55 // pred_region
          %v487 = vld [vmem:[%s1] sm:$0xf]
          %v488 = vld [vmem:[%s1 + $0x4] sm:$0xf]
          %v489 = vld [vmem:[%s1 + $0x8] sm:$0xf]
          %v490 = vld [vmem:[%s1 + $0xc] sm:$0xf]
          %v491 = vld [vmem:[%s1 + $0x10] sm:$0xf]
          %v492 = vld [vmem:[%s1 + $0x14] sm:$0xf]
          %v493 = vld [vmem:[%s1 + $0x18] sm:$0xf]
          %v494 = vld [vmem:[%s1 + $0x1c] sm:$0xf]
          %v495 = vld [vmem:[%s1 + $0x20] sm:$0xf]
          %v496 = vld [vmem:[%s1 + $0x24] sm:$0xf]
          %v497 = vld [vmem:[%s1 + $0x28] sm:$0xf]
          %v498 = vld [vmem:[%s1 + $0x2c] sm:$0xf]
          %v499 = vld [vmem:[%s1 + $0x30] sm:$0xf]
          %v500 = vld [vmem:[%s1 + $0x34] sm:$0xf]
          %v501 = vld [vmem:[%s1 + $0x38] sm:$0xf]
          %v502 = vld [vmem:[%s1 + $0x3c] sm:$0xf]
          %v503 = vld [vmem:[%s2] sm:$0x1]
          %v505 = vlaneseq
          %v506 = vshrl.u32 %v505, 7
          %v507 = vsub.s32 0, %v506
          %v508 = vrot.slane %v503, %v507
          %v526 = vunpack.c.l.b16 %v487
          %v527 = vunpack.c.l.b16 %v488
          %v528 = vunpack.c.l.b16 %v489
          %v529 = vunpack.c.l.b16 %v490
          %v530 = vunpack.c.l.b16 %v491
          %v531 = vunpack.c.l.b16 %v492
          %v532 = vunpack.c.l.b16 %v493
          %v533 = vunpack.c.l.b16 %v494
          %v534 = vunpack.c.l.b16 %v495
          %v535 = vunpack.c.l.b16 %v496
          %v536 = vunpack.c.l.b16 %v497
          %v537 = vunpack.c.l.b16 %v498
          %v538 = vunpack.c.l.b16 %v499
          %v539 = vunpack.c.l.b16 %v500
          %v540 = vunpack.c.l.b16 %v501
          %v541 = vunpack.c.l.b16 %v502
          %v542 = vpack.c.b16 %v527, %v526
          %v543 = vpack.c.b16 %v529, %v528
          %v544 = vpack.c.b16 %v531, %v530
          %v545 = vpack.c.b16 %v533, %v532
          %v546 = vpack.c.b16 %v535, %v534
          %v547 = vpack.c.b16 %v537, %v536
          %v548 = vpack.c.b16 %v539, %v538
          %v549 = vpack.c.b16 %v541, %v540
          %558 = vmatprep.subr.bf16.mxu0 0
          %559 = vmatpush1.bf16.msra.mxu0 %v542
          %560 = vmatprep.subr.bf16.mxu0 0
          %561 = vmatpush1.bf16.msra.mxu0 %v543
          %562 = vmatprep.subr.bf16.mxu0 0
          %563 = vmatpush1.bf16.msra.mxu0 %v544
          %564 = vmatprep.subr.bf16.mxu0 0
          %565 = vmatpush1.bf16.msra.mxu0 %v545
          %566 = vmatprep.subr.bf16.mxu0 0
          %567 = vmatpush1.bf16.msra.mxu0 %v546
          %568 = vmatprep.subr.bf16.mxu0 0
          %569 = vmatpush1.bf16.msra.mxu0 %v547
          %570 = vmatprep.subr.bf16.mxu0 0
          %571 = vmatpush1.bf16.msra.mxu0 %v548
          %572 = vmatprep.subr.bf16.mxu0 0
          %573 = vmatpush1.bf16.msra.mxu0 %v549
          %574 = vmatprep.subr.bf16.mxu0 0
          %575 = vmatpush1.bf16.msra.mxu0 0
          %576 = vmatprep.subr.bf16.mxu0 0
          %577 = vmatpush1.bf16.msra.mxu0 0
          %578 = vmatprep.subr.bf16.mxu0 0
          %579 = vmatpush1.bf16.msra.mxu0 0
          %580 = vmatprep.subr.bf16.mxu0 0
          %581 = vmatpush1.bf16.msra.mxu0 0
          %582 = vmatprep.subr.bf16.mxu0 0
          %583 = vmatpush1.bf16.msra.mxu0 0
          %584 = vmatprep.subr.bf16.mxu0 0
          %585 = vmatpush1.bf16.msra.mxu0 0
          %586 = vmatprep.subr.bf16.mxu0 0
          %587 = vmatpush1.bf16.msra.mxu0 0
          %588 = vmatprep.subr.bf16.mxu0 0
          %589 = vmatpush1.bf16.msra.mxu0 0
          %590 = vmatprep.mubr.bf16.mxu0 0
          %591 = vmatmul.mubr.bf16.gmra.mrb[0].mxu0 %v479
          %v592 = vpop.f32.mrb[0].mxu0
          %v593 = vadd.f32 %v508, %v592
          %v594 = vpop.f32.mrb[0].mxu0
          %v595 = vpop.f32.mrb[0].mxu0
          %v596 = vadd.f32 %v508, %v595
          %v597 = vpop.f32.mrb[0].mxu0
          %598 = vmatprep.mubr.bf16.mxu0 0
          %599 = vmatmul.mubr.bf16.gmra.mrb[0].mxu0 %v480
          %v600 = vpop.f32.mrb[0].mxu0
          %v601 = vadd.f32 %v508, %v600
          %v602 = vpop.f32.mrb[0].mxu0
          %v603 = vpop.f32.mrb[0].mxu0
          %v604 = vadd.f32 %v508, %v603
          %v605 = vpop.f32.mrb[0].mxu0
          %606 = vmatprep.mubr.bf16.mxu0 0
          %607 = vmatmul.mubr.bf16.gmra.mrb[0].mxu0 %v481
          %v608 = vpop.f32.mrb[0].mxu0
          %v609 = vadd.f32 %v508, %v608
          %v610 = vpop.f32.mrb[0].mxu0
          %v611 = vpop.f32.mrb[0].mxu0
          %v612 = vadd.f32 %v508, %v611
          %v613 = vpop.f32.mrb[0].mxu0
          %614 = vmatprep.mubr.bf16.mxu0 0
          %615 = vmatmul.mubr.bf16.gmra.mrb[0].mxu0 %v482
          %v616 = vpop.f32.mrb[0].mxu0
          %v617 = vadd.f32 %v508, %v616
          %v618 = vpop.f32.mrb[0].mxu0
          %v619 = vpop.f32.mrb[0].mxu0
          %v620 = vadd.f32 %v508, %v619
          %v621 = vpop.f32.mrb[0].mxu0
          %622 = vdwg.mxu0
          %v623 = vxor.u32 %v593, 2147483648
          %v624 = vxor.u32 %v596, 2147483648
          %v625 = vxor.u32 %v601, 2147483648
          %v626 = vxor.u32 %v604, 2147483648
          %v627 = vxor.u32 %v609, 2147483648
          %v628 = vxor.u32 %v612, 2147483648
          %v629 = vxor.u32 %v617, 2147483648
          %v630 = vxor.u32 %v620, 2147483648
          %v631 = vmul.f32 %v623, 1.442695
          %v632 = vpow.pop %v631
          %v633 = vmul.f32 %v624, 1.442695
          %v634 = vpow.pop %v633
          %v635 = vmul.f32 %v625, 1.442695
          %v636 = vpow.pop %v635
          %v637 = vmul.f32 %v626, 1.442695
          %v638 = vpow.pop %v637
          %v639 = vmul.f32 %v627, 1.442695
          %v640 = vpow.pop %v639
          %v641 = vmul.f32 %v628, 1.442695
          %v642 = vpow.pop %v641
          %v643 = vmul.f32 %v629, 1.442695
          %v644 = vpow.pop %v643
          %v645 = vmul.f32 %v630, 1.442695
          %v646 = vpow.pop %v645
          %v647 = vadd.f32 %v632, 1.0
          %v648 = vadd.f32 %v634, 1.0
          %v649 = vadd.f32 %v636, 1.0
          %v650 = vadd.f32 %v638, 1.0
          %v651 = vadd.f32 %v640, 1.0
          %v652 = vadd.f32 %v642, 1.0
          %v653 = vadd.f32 %v644, 1.0
          %v654 = vadd.f32 %v646, 1.0
          %v655 = vrcp.pop %v647
          %v656 = vmul.f32 1.0, %v655
          %v657 = vrcp.pop %v648
          %v658 = vmul.f32 1.0, %v657
          %v659 = vrcp.pop %v649
          %v660 = vmul.f32 1.0, %v659
          %v661 = vrcp.pop %v650
          %v662 = vmul.f32 1.0, %v661
          %v663 = vrcp.pop %v651
          %v664 = vmul.f32 1.0, %v663
          %v665 = vrcp.pop %v652
          %v666 = vmul.f32 1.0, %v665
          %v667 = vrcp.pop %v653
          %v668 = vmul.f32 1.0, %v667
          %v669 = vrcp.pop %v654
          %v670 = vmul.f32 1.0, %v669
          %v671 = vmul.f32 %v593, %v656
          %v672 = vmul.f32 %v596, %v658
          %v673 = vmul.f32 %v601, %v660
          %v674 = vmul.f32 %v604, %v662
          %v675 = vmul.f32 %v609, %v664
          %v676 = vmul.f32 %v612, %v666
          %v677 = vmul.f32 %v617, %v668
          %v678 = vmul.f32 %v620, %v670
          %v679 = vpack.c.bf16 %v672, %v671
          %v680 = vpack.c.bf16 %v674, %v673
          %v681 = vpack.c.bf16 %v676, %v675
          %v682 = vpack.c.bf16 %v678, %v677
          %v683 = vld [vmem:[%s3] sm:$0xf]
          %v684 = vld [vmem:[%s3 + $0x4] sm:$0xf]
          %v685 = vld [vmem:[%s3 + $0x8] sm:$0xf]
          %v686 = vld [vmem:[%s3 + $0xc] sm:$0xf]
          %v687 = vld [vmem:[%s3 + $0x10] sm:$0xf]
          %v688 = vld [vmem:[%s3 + $0x14] sm:$0xf]
          %v689 = vld [vmem:[%s3 + $0x18] sm:$0xf]
          %v690 = vld [vmem:[%s3 + $0x1c] sm:$0xf]
          %v691 = vld [vmem:[%s3 + $0x20] sm:$0xf]
          %v692 = vld [vmem:[%s3 + $0x24] sm:$0xf]
          %v693 = vld [vmem:[%s3 + $0x28] sm:$0xf]
          %v694 = vld [vmem:[%s3 + $0x2c] sm:$0xf]
          %v695 = vld [vmem:[%s3 + $0x30] sm:$0xf]
          %v696 = vld [vmem:[%s3 + $0x34] sm:$0xf]
          %v697 = vld [vmem:[%s3 + $0x38] sm:$0xf]
          %v698 = vld [vmem:[%s3 + $0x3c] sm:$0xf]
          %v699 = vld [vmem:[%s4] sm:$0x1]
          %v701 = vlaneseq
          %v702 = vshrl.u32 %v701, 7
          %v703 = vsub.s32 0, %v702
          %v704 = vrot.slane %v699, %v703
          %v722 = vunpack.c.l.b16 %v683
          %v723 = vunpack.c.l.b16 %v684
          %v724 = vunpack.c.l.b16 %v685
          %v725 = vunpack.c.l.b16 %v686
          %v726 = vunpack.c.l.b16 %v687
          %v727 = vunpack.c.l.b16 %v688
          %v728 = vunpack.c.l.b16 %v689
          %v729 = vunpack.c.l.b16 %v690
          %v730 = vunpack.c.l.b16 %v691
          %v731 = vunpack.c.l.b16 %v692
          %v732 = vunpack.c.l.b16 %v693
          %v733 = vunpack.c.l.b16 %v694
          %v734 = vunpack.c.l.b16 %v695
          %v735 = vunpack.c.l.b16 %v696
          %v736 = vunpack.c.l.b16 %v697
          %v737 = vunpack.c.l.b16 %v698
          %v738 = vpack.c.b16 %v723, %v722
          %v739 = vpack.c.b16 %v725, %v724
          %v740 = vpack.c.b16 %v727, %v726
          %v741 = vpack.c.b16 %v729, %v728
          %v742 = vpack.c.b16 %v731, %v730
          %v743 = vpack.c.b16 %v733, %v732
          %v744 = vpack.c.b16 %v735, %v734
          %v745 = vpack.c.b16 %v737, %v736
          %754 = vmatprep.subr.bf16.mxu0 0
          %755 = vmatpush1.bf16.msra.mxu0 %v738
          %756 = vmatprep.subr.bf16.mxu0 0
          %757 = vmatpush1.bf16.msra.mxu0 %v739
          %758 = vmatprep.subr.bf16.mxu0 0
          %759 = vmatpush1.bf16.msra.mxu0 %v740
          %760 = vmatprep.subr.bf16.mxu0 0
          %761 = vmatpush1.bf16.msra.mxu0 %v741
          %762 = vmatprep.subr.bf16.mxu0 0
          %763 = vmatpush1.bf16.msra.mxu0 %v742
          %764 = vmatprep.subr.bf16.mxu0 0
          %765 = vmatpush1.bf16.msra.mxu0 %v743
          %766 = vmatprep.subr.bf16.mxu0 0
          %767 = vmatpush1.bf16.msra.mxu0 %v744
          %768 = vmatprep.subr.bf16.mxu0 0
          %769 = vmatpush1.bf16.msra.mxu0 %v745
          %770 = vmatprep.subr.bf16.mxu0 0
          %771 = vmatpush1.bf16.msra.mxu0 0
          %772 = vmatprep.subr.bf16.mxu0 0
          %773 = vmatpush1.bf16.msra.mxu0 0
          %774 = vmatprep.subr.bf16.mxu0 0
          %775 = vmatpush1.bf16.msra.mxu0 0
          %776 = vmatprep.subr.bf16.mxu0 0
          %777 = vmatpush1.bf16.msra.mxu0 0
          %778 = vmatprep.subr.bf16.mxu0 0
          %779 = vmatpush1.bf16.msra.mxu0 0
          %780 = vmatprep.subr.bf16.mxu0 0
          %781 = vmatpush1.bf16.msra.mxu0 0
          %782 = vmatprep.subr.bf16.mxu0 0
          %783 = vmatpush1.bf16.msra.mxu0 0
          %784 = vmatprep.subr.bf16.mxu0 0
          %785 = vmatpush1.bf16.msra.mxu0 0
          %786 = vmatprep.mubr.bf16.mxu0 0
          %787 = vmatmul.mubr.bf16.gmra.mrb[0].mxu0 %v679
          %v788 = vpop.f32.mrb[0].mxu0
          %v789 = vadd.f32 %v704, %v788
          %v790 = vpop.f32.mrb[0].mxu0
          %v791 = vpop.f32.mrb[0].mxu0
          %v792 = vadd.f32 %v704, %v791
          %v793 = vpop.f32.mrb[0].mxu0
          %794 = vmatprep.mubr.bf16.mxu0 0
          %795 = vmatmul.mubr.bf16.gmra.mrb[0].mxu0 %v680
          %v796 = vpop.f32.mrb[0].mxu0
          %v797 = vadd.f32 %v704, %v796
          %v798 = vpop.f32.mrb[0].mxu0
          %v799 = vpop.f32.mrb[0].mxu0
          %v800 = vadd.f32 %v704, %v799
          %v801 = vpop.f32.mrb[0].mxu0
          %802 = vmatprep.mubr.bf16.mxu0 0
          %803 = vmatmul.mubr.bf16.gmra.mrb[0].mxu0 %v681
          %v804 = vpop.f32.mrb[0].mxu0
          %v805 = vadd.f32 %v704, %v804
          %v806 = vpop.f32.mrb[0].mxu0
          %v807 = vpop.f32.mrb[0].mxu0
          %v808 = vadd.f32 %v704, %v807
          %v809 = vpop.f32.mrb[0].mxu0
          %810 = vmatprep.mubr.bf16.mxu0 0
          %811 = vmatmul.mubr.bf16.gmra.mrb[0].mxu0 %v682
          %v812 = vpop.f32.mrb[0].mxu0
          %v813 = vadd.f32 %v704, %v812
          %v814 = vpop.f32.mrb[0].mxu0
          %v815 = vpop.f32.mrb[0].mxu0
          %v816 = vadd.f32 %v704, %v815
          %v817 = vpop.f32.mrb[0].mxu0
          %818 = vdwg.mxu0
          %v819 = vlaneseq
          %v820 = vand.u32 %v819, 127
          %vm821 = vcmask 31744
          %v822 = vsel %vm821, %v789, -inf
          %823 = vmax.xlane.f32.xlu0 %v822
          %v824 = vpop.xlane.xlu0 %823
          %v825 = vsel %vm821, %v792, -inf
          %826 = vmax.xlane.f32.xlu0 %v825
          %v827 = vpop.xlane.xlu0 %826
          %v828 = vsel %vm821, %v797, -inf
          %829 = vmax.xlane.f32.xlu0 %v828
          %v830 = vpop.xlane.xlu0 %829
          %v831 = vsel %vm821, %v800, -inf
          %832 = vmax.xlane.f32.xlu0 %v831
          %v833 = vpop.xlane.xlu0 %832
          %v834 = vsel %vm821, %v805, -inf
          %835 = vmax.xlane.f32.xlu0 %v834
          %v836 = vpop.xlane.xlu0 %835
          %v837 = vsel %vm821, %v808, -inf
          %838 = vmax.xlane.f32.xlu0 %v837
          %v839 = vpop.xlane.xlu0 %838
          %v840 = vsel %vm821, %v813, -inf
          %841 = vmax.xlane.f32.xlu0 %v840
          %v842 = vpop.xlane.xlu0 %841
          %v843 = vsel %vm821, %v816, -inf
          %844 = vmax.xlane.f32.xlu0 %v843
          %v845 = vpop.xlane.xlu0 %844
          %vm846 = vcmp.eq.f32.partialorder %v789, %v824
          %vm847 = vcmp.eq.f32.partialorder %v792, %v827
          %vm848 = vcmp.eq.f32.partialorder %v797, %v830
          %vm849 = vcmp.eq.f32.partialorder %v800, %v833
          %vm850 = vcmp.eq.f32.partialorder %v805, %v836
          %vm851 = vcmp.eq.f32.partialorder %v808, %v839
          %vm852 = vcmp.eq.f32.partialorder %v813, %v842
          %vm853 = vcmp.eq.f32.partialorder %v816, %v845
          %v854 = vsel %vm846, %v820, 4
          %v855 = vsel %vm847, %v820, 4
          %v856 = vsel %vm848, %v820, 4
          %v857 = vsel %vm849, %v820, 4
          %v858 = vsel %vm850, %v820, 4
          %v859 = vsel %vm851, %v820, 4
          %v860 = vsel %vm852, %v820, 4
          %v861 = vsel %vm853, %v820, 4
          %v862 = vsel %vm821, %v854, 2147483647
          %v863 = vand.u32 %v862, 65535
          %v864 = vshra.s32 %v862, 16
          %v865 = vcvt.s32.f32 %v863
          %v866 = vcvt.s32.f32 %v864
          %867 = vmin.xlane.f32.xlu0 %v866
          %v868 = vpop.xlane.xlu0 %867
          %vm869 = vcmp.eq.f32.partialorder %v866, %v868
          %v870 = vsel %vm869, %v865, inf
          %871 = vmin.xlane.f32.xlu0 %v870
          %v872 = vpop.xlane.xlu0 %871
          %v873 = vcvt.f32.s32 %v872
          %v874 = vcvt.f32.s32 %v868
          %v875 = vshll.u32 %v874, 16
          %v876 = vadd.s32 %v875, %v873
          %v877 = vsel %vm821, %v855, 2147483647
          %v878 = vand.u32 %v877, 65535
          %v879 = vshra.s32 %v877, 16
          %v880 = vcvt.s32.f32 %v878
          %v881 = vcvt.s32.f32 %v879
          %882 = vmin.xlane.f32.xlu0 %v881
          %v883 = vpop.xlane.xlu0 %882
          %vm884 = vcmp.eq.f32.partialorder %v881, %v883
          %v885 = vsel %vm884, %v880, inf
          %886 = vmin.xlane.f32.xlu0 %v885
          %v887 = vpop.xlane.xlu0 %886
          %v888 = vcvt.f32.s32 %v887
          %v889 = vcvt.f32.s32 %v883
          %v890 = vshll.u32 %v889, 16
          %v891 = vadd.s32 %v890, %v888
          %v892 = vsel %vm821, %v856, 2147483647
          %v893 = vand.u32 %v892, 65535
          %v894 = vshra.s32 %v892, 16
          %v895 = vcvt.s32.f32 %v893
          %v896 = vcvt.s32.f32 %v894
          %897 = vmin.xlane.f32.xlu0 %v896
          %v898 = vpop.xlane.xlu0 %897
          %vm899 = vcmp.eq.f32.partialorder %v896, %v898
          %v900 = vsel %vm899, %v895, inf
          %901 = vmin.xlane.f32.xlu0 %v900
          %v902 = vpop.xlane.xlu0 %901
          %v903 = vcvt.f32.s32 %v902
          %v904 = vcvt.f32.s32 %v898
          %v905 = vshll.u32 %v904, 16
          %v906 = vadd.s32 %v905, %v903
          %v907 = vsel %vm821, %v857, 2147483647
          %v908 = vand.u32 %v907, 65535
          %v909 = vshra.s32 %v907, 16
          %v910 = vcvt.s32.f32 %v908
          %v911 = vcvt.s32.f32 %v909
          %912 = vmin.xlane.f32.xlu0 %v911
          %v913 = vpop.xlane.xlu0 %912
          %vm914 = vcmp.eq.f32.partialorder %v911, %v913
          %v915 = vsel %vm914, %v910, inf
          %916 = vmin.xlane.f32.xlu0 %v915
          %v917 = vpop.xlane.xlu0 %916
          %v918 = vcvt.f32.s32 %v917
          %v919 = vcvt.f32.s32 %v913
          %v920 = vshll.u32 %v919, 16
          %v921 = vadd.s32 %v920, %v918
          %v922 = vsel %vm821, %v858, 2147483647
          %v923 = vand.u32 %v922, 65535
          %v924 = vshra.s32 %v922, 16
          %v925 = vcvt.s32.f32 %v923
          %v926 = vcvt.s32.f32 %v924
          %927 = vmin.xlane.f32.xlu0 %v926
          %v928 = vpop.xlane.xlu0 %927
          %vm929 = vcmp.eq.f32.partialorder %v926, %v928
          %v930 = vsel %vm929, %v925, inf
          %931 = vmin.xlane.f32.xlu0 %v930
          %v932 = vpop.xlane.xlu0 %931
          %v933 = vcvt.f32.s32 %v932
          %v934 = vcvt.f32.s32 %v928
          %v935 = vshll.u32 %v934, 16
          %v936 = vadd.s32 %v935, %v933
          %v937 = vsel %vm821, %v859, 2147483647
          %v938 = vand.u32 %v937, 65535
          %v939 = vshra.s32 %v937, 16
          %v940 = vcvt.s32.f32 %v938
          %v941 = vcvt.s32.f32 %v939
          %942 = vmin.xlane.f32.xlu0 %v941
          %v943 = vpop.xlane.xlu0 %942
          %vm944 = vcmp.eq.f32.partialorder %v941, %v943
          %v945 = vsel %vm944, %v940, inf
          %946 = vmin.xlane.f32.xlu0 %v945
          %v947 = vpop.xlane.xlu0 %946
          %v948 = vcvt.f32.s32 %v947
          %v949 = vcvt.f32.s32 %v943
          %v950 = vshll.u32 %v949, 16
          %v951 = vadd.s32 %v950, %v948
          %v952 = vsel %vm821, %v860, 2147483647
          %v953 = vand.u32 %v952, 65535
          %v954 = vshra.s32 %v952, 16
          %v955 = vcvt.s32.f32 %v953
          %v956 = vcvt.s32.f32 %v954
          %957 = vmin.xlane.f32.xlu0 %v956
          %v958 = vpop.xlane.xlu0 %957
          %vm959 = vcmp.eq.f32.partialorder %v956, %v958
          %v960 = vsel %vm959, %v955, inf
          %961 = vmin.xlane.f32.xlu0 %v960
          %v962 = vpop.xlane.xlu0 %961
          %v963 = vcvt.f32.s32 %v962
          %v964 = vcvt.f32.s32 %v958
          %v965 = vshll.u32 %v964, 16
          %v966 = vadd.s32 %v965, %v963
          %v967 = vsel %vm821, %v861, 2147483647
          %v968 = vand.u32 %v967, 65535
          %v969 = vshra.s32 %v967, 16
          %v970 = vcvt.s32.f32 %v968
          %v971 = vcvt.s32.f32 %v969
          %972 = vmin.xlane.f32.xlu0 %v971
          %v973 = vpop.xlane.xlu0 %972
          %vm974 = vcmp.eq.f32.partialorder %v971, %v973
          %v975 = vsel %vm974, %v970, inf
          %976 = vmin.xlane.f32.xlu0 %v975
          %v977 = vpop.xlane.xlu0 %976
          %v978 = vcvt.f32.s32 %v977
          %v979 = vcvt.f32.s32 %v973
          %v980 = vshll.u32 %v979, 16
          %v981 = vadd.s32 %v980, %v978
          %vm982 = vcmp.eq.s32.totalorder %v820, %v876
          %vm983 = vcmp.eq.s32.totalorder %v820, %v891
          %vm984 = vcmp.eq.s32.totalorder %v820, %v906
          %vm985 = vcmp.eq.s32.totalorder %v820, %v921
          %vm986 = vcmp.eq.s32.totalorder %v820, %v936
          %vm987 = vcmp.eq.s32.totalorder %v820, %v951
          %vm988 = vcmp.eq.s32.totalorder %v820, %v966
          %vm989 = vcmp.eq.s32.totalorder %v820, %v981
          %v990 = vsel %vm982, -inf, %v789
          %v991 = vsel %vm983, -inf, %v792
          %v992 = vsel %vm984, -inf, %v797
          %v993 = vsel %vm985, -inf, %v800
          %v994 = vsel %vm986, -inf, %v805
          %v995 = vsel %vm987, -inf, %v808
          %v996 = vsel %vm988, -inf, %v813
          %v997 = vsel %vm989, -inf, %v816
          %v998 = vsel %vm821, %v990, -inf
          %999 = vmax.xlane.f32.xlu0 %v998
          %v1000 = vpop.xlane.xlu0 %999
          %v1001 = vsel %vm821, %v991, -inf
          %1002 = vmax.xlane.f32.xlu0 %v1001
          %v1003 = vpop.xlane.xlu0 %1002
          %v1004 = vsel %vm821, %v992, -inf
          %1005 = vmax.xlane.f32.xlu0 %v1004
          %v1006 = vpop.xlane.xlu0 %1005
          %v1007 = vsel %vm821, %v993, -inf
          %1008 = vmax.xlane.f32.xlu0 %v1007
          %v1009 = vpop.xlane.xlu0 %1008
          %v1010 = vsel %vm821, %v994, -inf
          %1011 = vmax.xlane.f32.xlu0 %v1010
          %v1012 = vpop.xlane.xlu0 %1011
          %v1013 = vsel %vm821, %v995, -inf
          %1014 = vmax.xlane.f32.xlu0 %v1013
          %v1015 = vpop.xlane.xlu0 %1014
          %v1016 = vsel %vm821, %v996, -inf
          %1017 = vmax.xlane.f32.xlu0 %v1016
          %v1018 = vpop.xlane.xlu0 %1017
          %v1019 = vsel %vm821, %v997, -inf
          %1020 = vmax.xlane.f32.xlu0 %v1019
          %v1021 = vpop.xlane.xlu0 %1020
          %vm1022 = vcmp.eq.f32.partialorder %v990, %v1000
          %vm1023 = vcmp.eq.f32.partialorder %v991, %v1003
          %vm1024 = vcmp.eq.f32.partialorder %v992, %v1006
          %vm1025 = vcmp.eq.f32.partialorder %v993, %v1009
          %vm1026 = vcmp.eq.f32.partialorder %v994, %v1012
          %vm1027 = vcmp.eq.f32.partialorder %v995, %v1015
          %vm1028 = vcmp.eq.f32.partialorder %v996, %v1018
          %vm1029 = vcmp.eq.f32.partialorder %v997, %v1021
          %v1030 = vsel %vm1022, %v820, 4
          %v1031 = vsel %vm1023, %v820, 4
          %v1032 = vsel %vm1024, %v820, 4
          %v1033 = vsel %vm1025, %v820, 4
          %v1034 = vsel %vm1026, %v820, 4
          %v1035 = vsel %vm1027, %v820, 4
          %v1036 = vsel %vm1028, %v820, 4
          %v1037 = vsel %vm1029, %v820, 4
          %v1038 = vsel %vm821, %v1030, 2147483647
          %v1039 = vand.u32 %v1038, 65535
          %v1040 = vshra.s32 %v1038, 16
          %v1041 = vcvt.s32.f32 %v1039
          %v1042 = vcvt.s32.f32 %v1040
          %1043 = vmin.xlane.f32.xlu0 %v1042
          %v1044 = vpop.xlane.xlu0 %1043
          %vm1045 = vcmp.eq.f32.partialorder %v1042, %v1044
          %v1046 = vsel %vm1045, %v1041, inf
          %1047 = vmin.xlane.f32.xlu0 %v1046
          %v1048 = vpop.xlane.xlu0 %1047
          %v1049 = vcvt.f32.s32 %v1048
          %v1050 = vcvt.f32.s32 %v1044
          %v1051 = vshll.u32 %v1050, 16
          %v1052 = vadd.s32 %v1051, %v1049
          %v1053 = vsel %vm821, %v1031, 2147483647
          %v1054 = vand.u32 %v1053, 65535
          %v1055 = vshra.s32 %v1053, 16
          %v1056 = vcvt.s32.f32 %v1054
          %v1057 = vcvt.s32.f32 %v1055
          %1058 = vmin.xlane.f32.xlu0 %v1057
          %v1059 = vpop.xlane.xlu0 %1058
          %vm1060 = vcmp.eq.f32.partialorder %v1057, %v1059
          %v1061 = vsel %vm1060, %v1056, inf
          %1062 = vmin.xlane.f32.xlu0 %v1061
          %v1063 = vpop.xlane.xlu0 %1062
          %v1064 = vcvt.f32.s32 %v1063
          %v1065 = vcvt.f32.s32 %v1059
          %v1066 = vshll.u32 %v1065, 16
          %v1067 = vadd.s32 %v1066, %v1064
          %v1068 = vsel %vm821, %v1032, 2147483647
          %v1069 = vand.u32 %v1068, 65535
          %v1070 = vshra.s32 %v1068, 16
          %v1071 = vcvt.s32.f32 %v1069
          %v1072 = vcvt.s32.f32 %v1070
          %1073 = vmin.xlane.f32.xlu0 %v1072
          %v1074 = vpop.xlane.xlu0 %1073
          %vm1075 = vcmp.eq.f32.partialorder %v1072, %v1074
          %v1076 = vsel %vm1075, %v1071, inf
          %1077 = vmin.xlane.f32.xlu0 %v1076
          %v1078 = vpop.xlane.xlu0 %1077
          %v1079 = vcvt.f32.s32 %v1078
          %v1080 = vcvt.f32.s32 %v1074
          %v1081 = vshll.u32 %v1080, 16
          %v1082 = vadd.s32 %v1081, %v1079
          %v1083 = vsel %vm821, %v1033, 2147483647
          %v1084 = vand.u32 %v1083, 65535
          %v1085 = vshra.s32 %v1083, 16
          %v1086 = vcvt.s32.f32 %v1084
          %v1087 = vcvt.s32.f32 %v1085
          %1088 = vmin.xlane.f32.xlu0 %v1087
          %v1089 = vpop.xlane.xlu0 %1088
          %vm1090 = vcmp.eq.f32.partialorder %v1087, %v1089
          %v1091 = vsel %vm1090, %v1086, inf
          %1092 = vmin.xlane.f32.xlu0 %v1091
          %v1093 = vpop.xlane.xlu0 %1092
          %v1094 = vcvt.f32.s32 %v1093
          %v1095 = vcvt.f32.s32 %v1089
          %v1096 = vshll.u32 %v1095, 16
          %v1097 = vadd.s32 %v1096, %v1094
          %v1098 = vsel %vm821, %v1034, 2147483647
          %v1099 = vand.u32 %v1098, 65535
          %v1100 = vshra.s32 %v1098, 16
          %v1101 = vcvt.s32.f32 %v1099
          %v1102 = vcvt.s32.f32 %v1100
          %1103 = vmin.xlane.f32.xlu0 %v1102
          %v1104 = vpop.xlane.xlu0 %1103
          %vm1105 = vcmp.eq.f32.partialorder %v1102, %v1104
          %v1106 = vsel %vm1105, %v1101, inf
          %1107 = vmin.xlane.f32.xlu0 %v1106
          %v1108 = vpop.xlane.xlu0 %1107
          %v1109 = vcvt.f32.s32 %v1108
          %v1110 = vcvt.f32.s32 %v1104
          %v1111 = vshll.u32 %v1110, 16
          %v1112 = vadd.s32 %v1111, %v1109
          %v1113 = vsel %vm821, %v1035, 2147483647
          %v1114 = vand.u32 %v1113, 65535
          %v1115 = vshra.s32 %v1113, 16
          %v1116 = vcvt.s32.f32 %v1114
          %v1117 = vcvt.s32.f32 %v1115
          %1118 = vmin.xlane.f32.xlu0 %v1117
          %v1119 = vpop.xlane.xlu0 %1118
          %vm1120 = vcmp.eq.f32.partialorder %v1117, %v1119
          %v1121 = vsel %vm1120, %v1116, inf
          %1122 = vmin.xlane.f32.xlu0 %v1121
          %v1123 = vpop.xlane.xlu0 %1122
          %v1124 = vcvt.f32.s32 %v1123
          %v1125 = vcvt.f32.s32 %v1119
          %v1126 = vshll.u32 %v1125, 16
          %v1127 = vadd.s32 %v1126, %v1124
          %v1128 = vsel %vm821, %v1036, 2147483647
          %v1129 = vand.u32 %v1128, 65535
          %v1130 = vshra.s32 %v1128, 16
          %v1131 = vcvt.s32.f32 %v1129
          %v1132 = vcvt.s32.f32 %v1130
          %1133 = vmin.xlane.f32.xlu0 %v1132
          %v1134 = vpop.xlane.xlu0 %1133
          %vm1135 = vcmp.eq.f32.partialorder %v1132, %v1134
          %v1136 = vsel %vm1135, %v1131, inf
          %1137 = vmin.xlane.f32.xlu0 %v1136
          %v1138 = vpop.xlane.xlu0 %1137
          %v1139 = vcvt.f32.s32 %v1138
          %v1140 = vcvt.f32.s32 %v1134
          %v1141 = vshll.u32 %v1140, 16
          %v1142 = vadd.s32 %v1141, %v1139
          %v1143 = vsel %vm821, %v1037, 2147483647
          %v1144 = vand.u32 %v1143, 65535
          %v1145 = vshra.s32 %v1143, 16
          %v1146 = vcvt.s32.f32 %v1144
          %v1147 = vcvt.s32.f32 %v1145
          %1148 = vmin.xlane.f32.xlu0 %v1147
          %v1149 = vpop.xlane.xlu0 %1148
          %vm1150 = vcmp.eq.f32.partialorder %v1147, %v1149
          %v1151 = vsel %vm1150, %v1146, inf
          %1152 = vmin.xlane.f32.xlu0 %v1151
          %v1153 = vpop.xlane.xlu0 %1152
          %v1154 = vcvt.f32.s32 %v1153
          %v1155 = vcvt.f32.s32 %v1149
          %v1156 = vshll.u32 %v1155, 16
          %v1157 = vadd.s32 %v1156, %v1154
          %vm1158 = vcmp.eq.s32.totalorder %v820, %v1052
          %vm1159 = vcmp.eq.s32.totalorder %v820, %v1067
          %vm1160 = vcmp.eq.s32.totalorder %v820, %v1082
          %vm1161 = vcmp.eq.s32.totalorder %v820, %v1097
          %vm1162 = vcmp.eq.s32.totalorder %v820, %v1112
          %vm1163 = vcmp.eq.s32.totalorder %v820, %v1127
          %vm1164 = vcmp.eq.s32.totalorder %v820, %v1142
          %vm1165 = vcmp.eq.s32.totalorder %v820, %v1157
          %vm1166 = vmor %vm982, %vm1158
          %vm1167 = vmor %vm983, %vm1159
          %vm1168 = vmor %vm984, %vm1160
          %vm1169 = vmor %vm985, %vm1161
          %vm1170 = vmor %vm986, %vm1162
          %vm1171 = vmor %vm987, %vm1163
          %vm1172 = vmor %vm988, %vm1164
          %vm1173 = vmor %vm989, %vm1165
          %v1174 = vsel %vm1166, %v789, -inf
          %v1175 = vsel %vm1167, %v792, -inf
          %v1176 = vsel %vm1168, %v797, -inf
          %v1177 = vsel %vm1169, %v800, -inf
          %v1178 = vsel %vm1170, %v805, -inf
          %v1179 = vsel %vm1171, %v808, -inf
          %v1180 = vsel %vm1172, %v813, -inf
          %v1181 = vsel %vm1173, %v816, -inf
          %v1182 = vsel %vm821, %v1174, -inf
          %1183 = vmax.xlane.f32.xlu0 %v1182
          %v1184 = vpop.xlane.xlu0 %1183
          %v1185 = vsel %vm821, %v1175, -inf
          %1186 = vmax.xlane.f32.xlu0 %v1185
          %v1187 = vpop.xlane.xlu0 %1186
          %v1188 = vsel %vm821, %v1176, -inf
          %1189 = vmax.xlane.f32.xlu0 %v1188
          %v1190 = vpop.xlane.xlu0 %1189
          %v1191 = vsel %vm821, %v1177, -inf
          %1192 = vmax.xlane.f32.xlu0 %v1191
          %v1193 = vpop.xlane.xlu0 %1192
          %v1194 = vsel %vm821, %v1178, -inf
          %1195 = vmax.xlane.f32.xlu0 %v1194
          %v1196 = vpop.xlane.xlu0 %1195
          %v1197 = vsel %vm821, %v1179, -inf
          %1198 = vmax.xlane.f32.xlu0 %v1197
          %v1199 = vpop.xlane.xlu0 %1198
          %v1200 = vsel %vm821, %v1180, -inf
          %1201 = vmax.xlane.f32.xlu0 %v1200
          %v1202 = vpop.xlane.xlu0 %1201
          %v1203 = vsel %vm821, %v1181, -inf
          %1204 = vmax.xlane.f32.xlu0 %v1203
          %v1205 = vpop.xlane.xlu0 %1204
          %v1206 = vsub.f32 %v1174, %v1184
          %v1207 = vsub.f32 %v1175, %v1187
          %v1208 = vsub.f32 %v1176, %v1190
          %v1209 = vsub.f32 %v1177, %v1193
          %v1210 = vsub.f32 %v1178, %v1196
          %v1211 = vsub.f32 %v1179, %v1199
          %v1212 = vsub.f32 %v1180, %v1202
          %v1213 = vsub.f32 %v1181, %v1205
          %v1214 = vmul.f32 %v1206, 1.442695
          %v1215 = vpow.pop %v1214
          %v1216 = vmul.f32 %v1207, 1.442695
          %v1217 = vpow.pop %v1216
          %v1218 = vmul.f32 %v1208, 1.442695
          %v1219 = vpow.pop %v1218
          %v1220 = vmul.f32 %v1209, 1.442695
          %v1221 = vpow.pop %v1220
          %v1222 = vmul.f32 %v1210, 1.442695
          %v1223 = vpow.pop %v1222
          %v1224 = vmul.f32 %v1211, 1.442695
          %v1225 = vpow.pop %v1224
          %v1226 = vmul.f32 %v1212, 1.442695
          %v1227 = vpow.pop %v1226
          %v1228 = vmul.f32 %v1213, 1.442695
          %v1229 = vpow.pop %v1228
          %v1230 = vsel %vm821, %v1215, 0.0
          %1231 = vadd.xlane.f32.xlu0 %v1230
          %v1232 = vpop.xlane.xlu0 %1231
          %v1233 = vsel %vm821, %v1217, 0.0
          %1234 = vadd.xlane.f32.xlu0 %v1233
          %v1235 = vpop.xlane.xlu0 %1234
          %v1236 = vsel %vm821, %v1219, 0.0
          %1237 = vadd.xlane.f32.xlu0 %v1236
          %v1238 = vpop.xlane.xlu0 %1237
          %v1239 = vsel %vm821, %v1221, 0.0
          %1240 = vadd.xlane.f32.xlu0 %v1239
          %v1241 = vpop.xlane.xlu0 %1240
          %v1242 = vsel %vm821, %v1223, 0.0
          %1243 = vadd.xlane.f32.xlu0 %v1242
          %v1244 = vpop.xlane.xlu0 %1243
          %v1245 = vsel %vm821, %v1225, 0.0
          %1246 = vadd.xlane.f32.xlu0 %v1245
          %v1247 = vpop.xlane.xlu0 %1246
          %v1248 = vsel %vm821, %v1227, 0.0
          %1249 = vadd.xlane.f32.xlu0 %v1248
          %v1250 = vpop.xlane.xlu0 %1249
          %v1251 = vsel %vm821, %v1229, 0.0
          %1252 = vadd.xlane.f32.xlu0 %v1251
          %v1253 = vpop.xlane.xlu0 %1252
          %v1254 = vrcp.pop %v1232
          %v1255 = vrcp.pop %v1235
          %v1256 = vrcp.pop %v1238
          %v1257 = vrcp.pop %v1241
          %v1258 = vrcp.pop %v1244
          %v1259 = vrcp.pop %v1247
          %v1260 = vrcp.pop %v1250
          %v1261 = vrcp.pop %v1253
          %v1262 = vmul.f32 %v1215, %v1254
          %v1263 = vmul.f32 %v1217, %v1255
          %v1264 = vmul.f32 %v1219, %v1256
          %v1265 = vmul.f32 %v1221, %v1257
          %v1266 = vmul.f32 %v1223, %v1258
          %v1267 = vmul.f32 %v1225, %v1259
          %v1268 = vmul.f32 %v1227, %v1260
          %v1269 = vmul.f32 %v1229, %v1261
          %1270 = vst.msk [vmem:[#allocation2] sm:$0xff] %vm821, %v1262
          %1271 = vst.msk [vmem:[#allocation2 + $0x8] sm:$0xff] %vm821, %v1263
          %1272 = vst.msk [vmem:[#allocation2 + $0x10] sm:$0xff] %vm821, %v1264
          %1273 = vst.msk [vmem:[#allocation2 + $0x18] sm:$0xff] %vm821, %v1265
          %1274 = vst.msk [vmem:[#allocation2 + $0x20] sm:$0xff] %vm821, %v1266
          %1275 = vst.msk [vmem:[#allocation2 + $0x28] sm:$0xff] %vm821, %v1267
          %1276 = vst.msk [vmem:[#allocation2 + $0x30] sm:$0xff] %vm821, %v1268
          %1277 = vst.msk [vmem:[#allocation2 + $0x38] sm:$0xff] %vm821, %v1269
          %1278 = vst [vmem:[%s461] sm:$0xff] %v471
          %1279 = vst [vmem:[%s461 + $0x8] sm:$0xff] %v472
          %1280 = vst [vmem:[%s461 + $0x10] sm:$0xff] %v473
          %1281 = vst [vmem:[%s461 + $0x18] sm:$0xff] %v474
          %1282 = vst [vmem:[%s461 + $0x20] sm:$0xff] %v475
          %1283 = vst [vmem:[%s461 + $0x28] sm:$0xff] %v476
          %1284 = vst [vmem:[%s461 + $0x30] sm:$0xff] %v477
          %1285 = vst [vmem:[%s461 + $0x38] sm:$0xff] %v478
        $region72: #{tpu_custom_call.1} parent=55 // pred_fallthru
          _
        %v1286 = vld [vmem:[%s402] sm:$0xf]
        %v1287 = vld [vmem:[%s402 + $0x4] sm:$0xf]
        %v1288 = vld [vmem:[%s402 + $0x8] sm:$0xf]
        %v1289 = vld [vmem:[%s402 + $0xc] sm:$0xf]
        %v1290 = vld [vmem:[%s402 + $0x10] sm:$0xf]
        %v1291 = vld [vmem:[%s402 + $0x14] sm:$0xf]
        %v1292 = vld [vmem:[%s402 + $0x18] sm:$0xf]
        %v1293 = vld [vmem:[%s402 + $0x1c] sm:$0xf]
        %v1294 = vld [vmem:[%s402 + $0x20] sm:$0xf]
        %v1295 = vld [vmem:[%s402 + $0x24] sm:$0xf]
        %v1296 = vld [vmem:[%s402 + $0x28] sm:$0xf]
        %v1297 = vld [vmem:[%s402 + $0x2c] sm:$0xf]
        %v1298 = vld [vmem:[%s402 + $0x30] sm:$0xf]
        %v1299 = vld [vmem:[%s402 + $0x34] sm:$0xf]
        %v1300 = vld [vmem:[%s402 + $0x38] sm:$0xf]
        %v1301 = vld [vmem:[%s402 + $0x3c] sm:$0xf]
        %v1302 = vld [vmem:[%s465] sm:$0x1]
        %v1304 = vlaneseq
        %v1305 = vshrl.u32 %v1304, 7
        %v1306 = vsub.s32 0, %v1305
        %v1307 = vrot.slane %v1302, %v1306
        %v1325 = vunpack.c.l.b16 %v1286
        %v1326 = vunpack.c.l.b16 %v1287
        %v1327 = vunpack.c.l.b16 %v1288
        %v1328 = vunpack.c.l.b16 %v1289
        %v1329 = vunpack.c.l.b16 %v1290
        %v1330 = vunpack.c.l.b16 %v1291
        %v1331 = vunpack.c.l.b16 %v1292
        %v1332 = vunpack.c.l.b16 %v1293
        %v1333 = vunpack.c.l.b16 %v1294
        %v1334 = vunpack.c.l.b16 %v1295
        %v1335 = vunpack.c.l.b16 %v1296
        %v1336 = vunpack.c.l.b16 %v1297
        %v1337 = vunpack.c.l.b16 %v1298
        %v1338 = vunpack.c.l.b16 %v1299
        %v1339 = vunpack.c.l.b16 %v1300
        %v1340 = vunpack.c.l.b16 %v1301
        %v1341 = vpack.c.b16 %v1326, %v1325
        %v1342 = vpack.c.b16 %v1328, %v1327
        %v1343 = vpack.c.b16 %v1330, %v1329
        %v1344 = vpack.c.b16 %v1332, %v1331
        %v1345 = vpack.c.b16 %v1334, %v1333
        %v1346 = vpack.c.b16 %v1336, %v1335
        %v1347 = vpack.c.b16 %v1338, %v1337
        %v1348 = vpack.c.b16 %v1340, %v1339
        %1357 = vmatprep.subr.bf16.mxu0 0
        %1358 = vmatpush1.bf16.msra.mxu0 %v1341
        %1359 = vmatprep.subr.bf16.mxu0 0
        %1360 = vmatpush1.bf16.msra.mxu0 %v1342
        %1361 = vmatprep.subr.bf16.mxu0 0
        %1362 = vmatpush1.bf16.msra.mxu0 %v1343
        %1363 = vmatprep.subr.bf16.mxu0 0
        %1364 = vmatpush1.bf16.msra.mxu0 %v1344
        %1365 = vmatprep.subr.bf16.mxu0 0
        %1366 = vmatpush1.bf16.msra.mxu0 %v1345
        %1367 = vmatprep.subr.bf16.mxu0 0
        %1368 = vmatpush1.bf16.msra.mxu0 %v1346
        %1369 = vmatprep.subr.bf16.mxu0 0
        %1370 = vmatpush1.bf16.msra.mxu0 %v1347
        %1371 = vmatprep.subr.bf16.mxu0 0
        %1372 = vmatpush1.bf16.msra.mxu0 %v1348
        %1373 = vmatprep.subr.bf16.mxu0 0
        %1374 = vmatpush1.bf16.msra.mxu0 0
        %1375 = vmatprep.subr.bf16.mxu0 0
        %1376 = vmatpush1.bf16.msra.mxu0 0
        %1377 = vmatprep.subr.bf16.mxu0 0
        %1378 = vmatpush1.bf16.msra.mxu0 0
        %1379 = vmatprep.subr.bf16.mxu0 0
        %1380 = vmatpush1.bf16.msra.mxu0 0
        %1381 = vmatprep.subr.bf16.mxu0 0
        %1382 = vmatpush1.bf16.msra.mxu0 0
        %1383 = vmatprep.subr.bf16.mxu0 0
        %1384 = vmatpush1.bf16.msra.mxu0 0
        %1385 = vmatprep.subr.bf16.mxu0 0
        %1386 = vmatpush1.bf16.msra.mxu0 0
        %1387 = vmatprep.subr.bf16.mxu0 0
        %1388 = vmatpush1.bf16.msra.mxu0 0
        %1389 = vmatprep.mubr.bf16.mxu0 0
        %1390 = vmatmul.mubr.bf16.gmra.mrb[0].mxu0 %v479
        %v1391 = vpop.f32.mrb[0].mxu0
        %v1392 = vadd.f32 %v1307, %v1391
        %v1393 = vpop.f32.mrb[0].mxu0
        %v1394 = vpop.f32.mrb[0].mxu0
        %v1395 = vadd.f32 %v1307, %v1394
        %v1396 = vpop.f32.mrb[0].mxu0
        %1397 = vmatprep.mubr.bf16.mxu0 0
        %1398 = vmatmul.mubr.bf16.gmra.mrb[0].mxu0 %v480
        %v1399 = vpop.f32.mrb[0].mxu0
        %v1400 = vadd.f32 %v1307, %v1399
        %v1401 = vpop.f32.mrb[0].mxu0
        %v1402 = vpop.f32.mrb[0].mxu0
        %v1403 = vadd.f32 %v1307, %v1402
        %v1404 = vpop.f32.mrb[0].mxu0
        %1405 = vmatprep.mubr.bf16.mxu0 0
        %1406 = vmatmul.mubr.bf16.gmra.mrb[0].mxu0 %v481
        %v1407 = vpop.f32.mrb[0].mxu0
        %v1408 = vadd.f32 %v1307, %v1407
        %v1409 = vpop.f32.mrb[0].mxu0
        %v1410 = vpop.f32.mrb[0].mxu0
        %v1411 = vadd.f32 %v1307, %v1410
        %v1412 = vpop.f32.mrb[0].mxu0
        %1413 = vmatprep.mubr.bf16.mxu0 0
        %1414 = vmatmul.mubr.bf16.gmra.mrb[0].mxu0 %v482
        %v1415 = vpop.f32.mrb[0].mxu0
        %v1416 = vadd.f32 %v1307, %v1415
        %v1417 = vpop.f32.mrb[0].mxu0
        %v1418 = vpop.f32.mrb[0].mxu0
        %v1419 = vadd.f32 %v1307, %v1418
        %v1420 = vpop.f32.mrb[0].mxu0
        %1421 = vdwg.mxu0
        %v1422 = vxor.u32 %v1392, 2147483648
        %v1423 = vxor.u32 %v1395, 2147483648
        %v1424 = vxor.u32 %v1400, 2147483648
        %v1425 = vxor.u32 %v1403, 2147483648
        %v1426 = vxor.u32 %v1408, 2147483648
        %v1427 = vxor.u32 %v1411, 2147483648
        %v1428 = vxor.u32 %v1416, 2147483648
        %v1429 = vxor.u32 %v1419, 2147483648
        %v1430 = vmul.f32 %v1422, 1.442695
        %v1431 = vpow.pop %v1430
        %v1432 = vmul.f32 %v1423, 1.442695
        %v1433 = vpow.pop %v1432
        %v1434 = vmul.f32 %v1424, 1.442695
        %v1435 = vpow.pop %v1434
        %v1436 = vmul.f32 %v1425, 1.442695
        %v1437 = vpow.pop %v1436
        %v1438 = vmul.f32 %v1426, 1.442695
        %v1439 = vpow.pop %v1438
        %v1440 = vmul.f32 %v1427, 1.442695
        %v1441 = vpow.pop %v1440
        %v1442 = vmul.f32 %v1428, 1.442695
        %v1443 = vpow.pop %v1442
        %v1444 = vmul.f32 %v1429, 1.442695
        %v1445 = vpow.pop %v1444
        %v1446 = vadd.f32 %v1431, 1.0
        %v1447 = vadd.f32 %v1433, 1.0
        %v1448 = vadd.f32 %v1435, 1.0
        %v1449 = vadd.f32 %v1437, 1.0
        %v1450 = vadd.f32 %v1439, 1.0
        %v1451 = vadd.f32 %v1441, 1.0
        %v1452 = vadd.f32 %v1443, 1.0
        %v1453 = vadd.f32 %v1445, 1.0
        %v1454 = vrcp.pop %v1446
        %v1455 = vmul.f32 1.0, %v1454
        %v1456 = vrcp.pop %v1447
        %v1457 = vmul.f32 1.0, %v1456
        %v1458 = vrcp.pop %v1448
        %v1459 = vmul.f32 1.0, %v1458
        %v1460 = vrcp.pop %v1449
        %v1461 = vmul.f32 1.0, %v1460
        %v1462 = vrcp.pop %v1450
        %v1463 = vmul.f32 1.0, %v1462
        %v1464 = vrcp.pop %v1451
        %v1465 = vmul.f32 1.0, %v1464
        %v1466 = vrcp.pop %v1452
        %v1467 = vmul.f32 1.0, %v1466
        %v1468 = vrcp.pop %v1453
        %v1469 = vmul.f32 1.0, %v1468
        %v1470 = vmul.f32 %v1392, %v1455
        %v1471 = vmul.f32 %v1395, %v1457
        %v1472 = vmul.f32 %v1400, %v1459
        %v1473 = vmul.f32 %v1403, %v1461
        %v1474 = vmul.f32 %v1408, %v1463
        %v1475 = vmul.f32 %v1411, %v1465
        %v1476 = vmul.f32 %v1416, %v1467
        %v1477 = vmul.f32 %v1419, %v1469
        %v1478 = vpack.c.bf16 %v1471, %v1470
        %v1479 = vpack.c.bf16 %v1473, %v1472
        %v1480 = vpack.c.bf16 %v1475, %v1474
        %v1481 = vpack.c.bf16 %v1477, %v1476
        %v1482 = vld [vmem:[%s411] sm:$0xf]
        %v1483 = vld [vmem:[%s411 + $0x4] sm:$0xf]
        %v1484 = vld [vmem:[%s411 + $0x8] sm:$0xf]
        %v1485 = vld [vmem:[%s411 + $0xc] sm:$0xf]
        %v1486 = vld [vmem:[%s411 + $0x10] sm:$0xf]
        %v1487 = vld [vmem:[%s411 + $0x14] sm:$0xf]
        %v1488 = vld [vmem:[%s411 + $0x18] sm:$0xf]
        %v1489 = vld [vmem:[%s411 + $0x1c] sm:$0xf]
        %v1490 = vld [vmem:[%s411 + $0x20] sm:$0xf]
        %v1491 = vld [vmem:[%s411 + $0x24] sm:$0xf]
        %v1492 = vld [vmem:[%s411 + $0x28] sm:$0xf]
        %v1493 = vld [vmem:[%s411 + $0x2c] sm:$0xf]
        %v1494 = vld [vmem:[%s411 + $0x30] sm:$0xf]
        %v1495 = vld [vmem:[%s411 + $0x34] sm:$0xf]
        %v1496 = vld [vmem:[%s411 + $0x38] sm:$0xf]
        %v1497 = vld [vmem:[%s411 + $0x3c] sm:$0xf]
        %v1498 = vld [vmem:[%s468] sm:$0x1]
        %v1500 = vlaneseq
        %v1501 = vshrl.u32 %v1500, 7
        %v1502 = vsub.s32 0, %v1501
        %v1503 = vrot.slane %v1498, %v1502
        %v1521 = vunpack.c.l.b16 %v1482
        %v1522 = vunpack.c.l.b16 %v1483
        %v1523 = vunpack.c.l.b16 %v1484
        %v1524 = vunpack.c.l.b16 %v1485
        %v1525 = vunpack.c.l.b16 %v1486
        %v1526 = vunpack.c.l.b16 %v1487
        %v1527 = vunpack.c.l.b16 %v1488
        %v1528 = vunpack.c.l.b16 %v1489
        %v1529 = vunpack.c.l.b16 %v1490
        %v1530 = vunpack.c.l.b16 %v1491
        %v1531 = vunpack.c.l.b16 %v1492
        %v1532 = vunpack.c.l.b16 %v1493
        %v1533 = vunpack.c.l.b16 %v1494
        %v1534 = vunpack.c.l.b16 %v1495
        %v1535 = vunpack.c.l.b16 %v1496
        %v1536 = vunpack.c.l.b16 %v1497
        %v1537 = vpack.c.b16 %v1522, %v1521
        %v1538 = vpack.c.b16 %v1524, %v1523
        %v1539 = vpack.c.b16 %v1526, %v1525
        %v1540 = vpack.c.b16 %v1528, %v1527
        %v1541 = vpack.c.b16 %v1530, %v1529
        %v1542 = vpack.c.b16 %v1532, %v1531
        %v1543 = vpack.c.b16 %v1534, %v1533
        %v1544 = vpack.c.b16 %v1536, %v1535
        %1553 = vmatprep.subr.bf16.mxu0 0
        %1554 = vmatpush1.bf16.msra.mxu0 %v1537
        %1555 = vmatprep.subr.bf16.mxu0 0
        %1556 = vmatpush1.bf16.msra.mxu0 %v1538
        %1557 = vmatprep.subr.bf16.mxu0 0
        %1558 = vmatpush1.bf16.msra.mxu0 %v1539
        %1559 = vmatprep.subr.bf16.mxu0 0
        %1560 = vmatpush1.bf16.msra.mxu0 %v1540
        %1561 = vmatprep.subr.bf16.mxu0 0
        %1562 = vmatpush1.bf16.msra.mxu0 %v1541
        %1563 = vmatprep.subr.bf16.mxu0 0
        %1564 = vmatpush1.bf16.msra.mxu0 %v1542
        %1565 = vmatprep.subr.bf16.mxu0 0
        %1566 = vmatpush1.bf16.msra.mxu0 %v1543
        %1567 = vmatprep.subr.bf16.mxu0 0
        %1568 = vmatpush1.bf16.msra.mxu0 %v1544
        %1569 = vmatprep.subr.bf16.mxu0 0
        %1570 = vmatpush1.bf16.msra.mxu0 0
        %1571 = vmatprep.subr.bf16.mxu0 0
        %1572 = vmatpush1.bf16.msra.mxu0 0
        %1573 = vmatprep.subr.bf16.mxu0 0
        %1574 = vmatpush1.bf16.msra.mxu0 0
        %1575 = vmatprep.subr.bf16.mxu0 0
        %1576 = vmatpush1.bf16.msra.mxu0 0
        %1577 = vmatprep.subr.bf16.mxu0 0
        %1578 = vmatpush1.bf16.msra.mxu0 0
        %1579 = vmatprep.subr.bf16.mxu0 0
        %1580 = vmatpush1.bf16.msra.mxu0 0
        %1581 = vmatprep.subr.bf16.mxu0 0
        %1582 = vmatpush1.bf16.msra.mxu0 0
        %1583 = vmatprep.subr.bf16.mxu0 0
        %1584 = vmatpush1.bf16.msra.mxu0 0
        %1585 = vmatprep.mubr.bf16.mxu0 0
        %1586 = vmatmul.mubr.bf16.gmra.mrb[0].mxu0 %v1478
        %v1587 = vpop.f32.mrb[0].mxu0
        %v1588 = vadd.f32 %v1503, %v1587
        %v1589 = vpop.f32.mrb[0].mxu0
        %v1590 = vpop.f32.mrb[0].mxu0
        %v1591 = vadd.f32 %v1503, %v1590
        %v1592 = vpop.f32.mrb[0].mxu0
        %1593 = vmatprep.mubr.bf16.mxu0 0
        %1594 = vmatmul.mubr.bf16.gmra.mrb[0].mxu0 %v1479
        %v1595 = vpop.f32.mrb[0].mxu0
        %v1596 = vadd.f32 %v1503, %v1595
        %v1597 = vpop.f32.mrb[0].mxu0
        %v1598 = vpop.f32.mrb[0].mxu0
        %v1599 = vadd.f32 %v1503, %v1598
        %v1600 = vpop.f32.mrb[0].mxu0
        %1601 = vmatprep.mubr.bf16.mxu0 0
        %1602 = vmatmul.mubr.bf16.gmra.mrb[0].mxu0 %v1480
        %v1603 = vpop.f32.mrb[0].mxu0
        %v1604 = vadd.f32 %v1503, %v1603
        %v1605 = vpop.f32.mrb[0].mxu0
        %v1606 = vpop.f32.mrb[0].mxu0
        %v1607 = vadd.f32 %v1503, %v1606
        %v1608 = vpop.f32.mrb[0].mxu0
        %1609 = vmatprep.mubr.bf16.mxu0 0
        %1610 = vmatmul.mubr.bf16.gmra.mrb[0].mxu0 %v1481
        %v1611 = vpop.f32.mrb[0].mxu0
        %v1612 = vadd.f32 %v1503, %v1611
        %v1613 = vpop.f32.mrb[0].mxu0
        %v1614 = vpop.f32.mrb[0].mxu0
        %v1615 = vadd.f32 %v1503, %v1614
        %v1616 = vpop.f32.mrb[0].mxu0
        %1617 = vdwg.mxu0
        %v1618 = vld [vmem:[#allocation2] sm:$0xff]
        %v1619 = vld [vmem:[#allocation2 + $0x8] sm:$0xff]
        %v1620 = vld [vmem:[#allocation2 + $0x10] sm:$0xff]
        %v1621 = vld [vmem:[#allocation2 + $0x18] sm:$0xff]
        %v1622 = vld [vmem:[#allocation2 + $0x20] sm:$0xff]
        %v1623 = vld [vmem:[#allocation2 + $0x28] sm:$0xff]
        %v1624 = vld [vmem:[#allocation2 + $0x30] sm:$0xff]
        %v1625 = vld [vmem:[#allocation2 + $0x38] sm:$0xff]
        %v1626 = vlaneseq
        %v1627 = vand.u32 %v1626, 127
        %v1628 = vstv %s34
        %vm1629 = vcmp.eq.s32.totalorder %v1627, %v1628
        %v1630 = vsel %vm1629, %v1618, 0.0
        %v1631 = vsel %vm1629, %v1619, 0.0
        %v1632 = vsel %vm1629, %v1620, 0.0
        %v1633 = vsel %vm1629, %v1621, 0.0
        %v1634 = vsel %vm1629, %v1622, 0.0
        %v1635 = vsel %vm1629, %v1623, 0.0
        %v1636 = vsel %vm1629, %v1624, 0.0
        %v1637 = vsel %vm1629, %v1625, 0.0
        %vm1638 = vcmask 31744
        %v1639 = vsel %vm1638, %v1630, 0.0
        %1640 = vadd.xlane.f32.xlu0 %v1639
        %v1641 = vpop.xlane.xlu0 %1640
        %v1642 = vsel %vm1638, %v1631, 0.0
        %1643 = vadd.xlane.f32.xlu0 %v1642
        %v1644 = vpop.xlane.xlu0 %1643
        %v1645 = vsel %vm1638, %v1632, 0.0
        %1646 = vadd.xlane.f32.xlu0 %v1645
        %v1647 = vpop.xlane.xlu0 %1646
        %v1648 = vsel %vm1638, %v1633, 0.0
        %1649 = vadd.xlane.f32.xlu0 %v1648
        %v1650 = vpop.xlane.xlu0 %1649
        %v1651 = vsel %vm1638, %v1634, 0.0
        %1652 = vadd.xlane.f32.xlu0 %v1651
        %v1653 = vpop.xlane.xlu0 %1652
        %v1654 = vsel %vm1638, %v1635, 0.0
        %1655 = vadd.xlane.f32.xlu0 %v1654
        %v1656 = vpop.xlane.xlu0 %1655
        %v1657 = vsel %vm1638, %v1636, 0.0
        %1658 = vadd.xlane.f32.xlu0 %v1657
        %v1659 = vpop.xlane.xlu0 %1658
        %v1660 = vsel %vm1638, %v1637, 0.0
        %1661 = vadd.xlane.f32.xlu0 %v1660
        %v1662 = vpop.xlane.xlu0 %1661
        %v1663 = vld [vmem:[%s461] sm:$0xff]
        %v1664 = vld [vmem:[%s461 + $0x8] sm:$0xff]
        %v1665 = vld [vmem:[%s461 + $0x10] sm:$0xff]
        %v1666 = vld [vmem:[%s461 + $0x18] sm:$0xff]
        %v1667 = vld [vmem:[%s461 + $0x20] sm:$0xff]
        %v1668 = vld [vmem:[%s461 + $0x28] sm:$0xff]
        %v1669 = vld [vmem:[%s461 + $0x30] sm:$0xff]
        %v1670 = vld [vmem:[%s461 + $0x38] sm:$0xff]
        %v1671 = vmul.f32 %v1641, %v1588
        %v1672 = vmul.f32 %v1644, %v1591
        %v1673 = vmul.f32 %v1647, %v1596
        %v1674 = vmul.f32 %v1650, %v1599
        %v1675 = vmul.f32 %v1653, %v1604
        %v1676 = vmul.f32 %v1656, %v1607
        %v1677 = vmul.f32 %v1659, %v1612
        %v1678 = vmul.f32 %v1662, %v1615
        %v1679 = vadd.f32 %v1663, %v1671
        %v1680 = vadd.f32 %v1664, %v1672
        %v1681 = vadd.f32 %v1665, %v1673
        %v1682 = vadd.f32 %v1666, %v1674
        %v1683 = vadd.f32 %v1667, %v1675
        %v1684 = vadd.f32 %v1668, %v1676
        %v1685 = vadd.f32 %v1669, %v1677
        %v1686 = vadd.f32 %v1670, %v1678
        %1687 = vst [vmem:[%s461] sm:$0xff] %v1679
        %1688 = vst [vmem:[%s461 + $0x8] sm:$0xff] %v1680
        %1689 = vst [vmem:[%s461 + $0x10] sm:$0xff] %v1681
        %1690 = vst [vmem:[%s461 + $0x18] sm:$0xff] %v1682
        %1691 = vst [vmem:[%s461 + $0x20] sm:$0xff] %v1683
        %1692 = vst [vmem:[%s461 + $0x28] sm:$0xff] %v1684
        %1693 = vst [vmem:[%s461 + $0x30] sm:$0xff] %v1685
        %1694 = vst [vmem:[%s461 + $0x38] sm:$0xff] %v1686
        %s1695 = sand.u32 %s263, 1
        %s1696 = scalar_lea.sflag [#allocation5], %s1695
        %s1697 = sand.u32 %s263, 1
        %s1698 = smul.addr %s1697, 64
        %s1699 = scalar_lea.vmem [#allocation9], %s1698
        // Predicated region
        $region73: #{tpu_custom_call.1} parent=55 // pred_check
          %p1700 = pneg %p273
        $region74: #{tpu_custom_call.1} parent=55 // pred_check_branch
          %1702 = sbr.rel (%p1700) target = $region76
        $region75: #{tpu_custom_call.1} parent=55 // pred_region
          %s1703 = smul.u32 8, %s33
          %s1705 = ssub.s32 1024, 1024
          %1706 = vsyncadd %s1696, %s1705
          %s1707 = smul.addr %s1703, 128
          %s1708 = scalar_lea.hbm %s9, %s1707
          %s1709 = sshll.u32 %s1699, 4
          %s1710 = int_to_ptr.vmem [resolvable:$true] %s1709
          %1715 = dma.vmem_to_hbm [thread:$0]  %s1710, 1024, %s1708, %s1696, 128, 128, 8
        $region76: #{tpu_custom_call.1} parent=55 // pred_fallthru
          _
      $region56: #{tpu_custom_call.1} parent=5 // pred_fallthru
        _
      %p1716 = scmp.le.s32.totalorder 2, %s24
      // Predicated region
      $region77: #{tpu_custom_call.1} parent=5 // pred_check
        %p1717 = pneg %p1716
      $region78: #{tpu_custom_call.1} parent=5 // pred_check_branch
        %1719 = sbr.rel (%p1717) target = $region80
      $region79: #{tpu_custom_call.1} parent=5 // pred_region
        %s1720 = ssub.s32 %s24, 2
        // Predicated region
        $region81: #{tpu_custom_call.1} parent=79 // pred_check
          %p1721 = pneg %p279
        $region82: #{tpu_custom_call.1} parent=79 // pred_check_branch
          %1723 = sbr.rel (%p1721) target = $region84
        $region83: #{tpu_custom_call.1} parent=79 // pred_region
          %s1724 = sand.u32 %s264, 1
          %s1725 = scalar_lea.sflag [#allocation5], %s1724
          %s1726 = sand.u32 %s264, 1
          %s1727 = smul.addr %s1726, 64
          %s1728 = scalar_lea.vmem [#allocation9], %s1727
          %1729 = dma.done %s1725, 1024
        $region84: #{tpu_custom_call.1} parent=79 // pred_fallthru
          _
      $region80: #{tpu_custom_call.1} parent=5 // pred_fallthru
        _
    $region6: #{tpu_custom_call.1} parent=1 // loop_footer
      %s28 = sadd.s32 1, %s24
    $region7: #{tpu_custom_call.1} parent=1 // loop_footer_branch
      %23 = sbr.rel target = $region3
    $region8: #{tpu_custom_call.1} parent=1 // loop_exit
      _
    %1730 = vsyncpa [#allocation4], 1
    %s1731 = scalar_lea.sflag [#allocation4], 1
    %1732 = vsyncpa %s1731, 1
    %1733 = vsyncpa [#allocation7], 1
    %s1734 = scalar_lea.sflag [#allocation7], 1
    %1735 = vsyncpa %s1734, 1
    %1736 = vsyncpa [#allocation5], 1
    %s1737 = scalar_lea.sflag [#allocation5], 1
    %1738 = vsyncpa %s1737, 1

</llo_original>
